<compile_context>
chip_gen: v7x
topology: tpu7x:2x2x1
jax: 0.10.0
libtpu: 0.0.40
codegen_flags: <defaults>
</compile_context>

<pallas_src>
import functools
import math

import jax
import jax.numpy as jnp
from jax import lax
from jax.experimental import pallas as pl
from jax.experimental.pallas import tpu as pltpu


def source_embedding_kernel(ids_ref, emb_ref, pe_ref, out_ref, *,
                            scale, v_chunk, n_chunks):
    """One grid step: gather a (TILE_S, D) tile of embeddings for batch row b via a
    vocab-chunked one-hot MXU contraction, scale by sqrt(d_model), add PE."""
    b = pl.program_id(1)                        # grid = (seq_tiles, batch); batch innermost
    tile_s = out_ref.shape[1]
    d = out_ref.shape[2]

    # (1, TILE_S) int32 ids for this batch row of the current sequence tile.
    ids_row = ids_ref[pl.ds(b, 1), :]

    # Vocab on the sublane axis so no transpose of the ids vector is needed.
    vocab_iota = lax.broadcasted_iota(jnp.int32, (v_chunk, tile_s), 0)

    def gather_chunk(v0):
        # Exact 0/1 one-hot in f32; with HIGHEST precision the MXU contraction
        # reproduces the f32 table rows exactly (out-of-range ids -> zero row).
        oh_t = jnp.where(vocab_iota + v0 == ids_row, 1.0, 0.0).astype(jnp.float32)
        return lax.dot_general(
            oh_t,
            emb_ref[pl.ds(v0, v_chunk), :],
            dimension_numbers=(((0,), (0,)), ((), ())),
            preferred_element_type=jnp.float32,
            precision=lax.Precision.HIGHEST,
        )

    if n_chunks == 1:
        acc = gather_chunk(0)
    else:
        def body(c, acc):
            v0 = pl.multiple_of(c * v_chunk, v_chunk)
            return acc + gather_chunk(v0)
        acc = lax.fori_loop(0, n_chunks, body,
                            jnp.zeros((tile_s, d), jnp.float32))

    # sqrt(d_model) scale in the epilogue (VPU) + positional-encoding add.
    out_ref[0, :, :] = (acc * scale + pe_ref[...]).astype(out_ref.dtype)


def make_positional_encoding(max_len, d_model):
    position = jnp.arange(max_len, dtype=jnp.float32)[:, None]
    div_term = jnp.exp(
        jnp.arange(0, d_model, 2, dtype=jnp.float32) * (-math.log(10000.0) / d_model)
    )
    pe = jnp.zeros((max_len, d_model), dtype=jnp.float32)
    pe = pe.at[:, 0::2].set(jnp.sin(position * div_term))
    pe = pe.at[:, 1::2].set(jnp.cos(position * div_term))
    return pe


def _vmem_capacity_bytes():
    try:
        return int(pltpu.get_tpu_info().vmem_capacity_bytes)
    except Exception:
        return 64 * 1024 * 1024   # conservative (v7x per-TC VMEM)


def source_embedding(ids, emb_table, pe_full):
    """emb_table[ids] * sqrt(d_model) + pe[:S]  (dropout = eval-mode identity)."""
    B, S = ids.shape
    V, D = emb_table.shape
    scale = float(math.sqrt(D))          # PyTorch scales by sqrt(d_model); d_model == D

    # Sequence tiling: 512-row tiles for long sequences (per-step overhead
    # amortization), otherwise one sublane-aligned tile (no post-kernel slice).
    if S >= 512:
        tile_s = 512
    else:
        tile_s = max(8, 8 * pl.cdiv(S, 8))
    n_t = pl.cdiv(S, tile_s)
    s_pad = n_t * tile_s

    # Vocab chunking for the one-hot contraction keeps the (V_chunk, TILE_S)
    # temporary to a few hundred KiB regardless of vocabulary size.
    if V >= 512:
        v_chunk = 512
    else:
        v_chunk = max(8, 8 * pl.cdiv(V, 8))
    n_chunks = pl.cdiv(V, v_chunk)
    v_pad = n_chunks * v_chunk

    ids_p = ids.astype(jnp.int32)
    pe = pe_full[:S].astype(jnp.float32)
    emb_p = emb_table.astype(jnp.float32)
    if s_pad != S:
        ids_p = jnp.pad(ids_p, ((0, 0), (0, s_pad - S)))
        pe = jnp.pad(pe, ((0, s_pad - S), (0, 0)))
    if v_pad != V:
        emb_p = jnp.pad(emb_p, ((0, v_pad - V), (0, 0)))

    # Generation-aware scoped-VMEM budget (resident table + streamed tiles +
    # in-kernel one-hot / accumulator temporaries + headroom), capped below
    # the physical per-core VMEM.
    cap = _vmem_capacity_bytes()
    table_bytes = v_pad * D * 4
    needed = (2 * table_bytes                # worst case: table double-buffered (fallback path)
              + 2 * B * tile_s * 4           # ids tile (double-buffered)
              + 4 * tile_s * D * 4           # PE + output tiles (double-buffered)
              + 2 * v_chunk * tile_s * 4     # iota + one-hot temporaries
              + v_chunk * D * 4              # table chunk slice
              + tile_s * D * 4               # f32 accumulator
              + (4 << 20))                   # misc / spill headroom
    vmem_limit = int(min(max(needed, 32 << 20), cap - (10 << 20)))

    kernel = functools.partial(source_embedding_kernel, scale=scale,
                               v_chunk=v_chunk, n_chunks=n_chunks)

    def build(table_spec):
        return pl.pallas_call(
            kernel,
            out_shape=jax.ShapeDtypeStruct((B, s_pad, D), jnp.float32),
            grid_spec=pltpu.PrefetchScalarGridSpec(
                num_scalar_prefetch=0,
                grid=(n_t, B),   # batch innermost -> ids / PE / table blocks stay resident
                in_specs=[
                    pl.BlockSpec((B, tile_s), lambda t, b: (0, t)),   # token ids (all batches, this seq tile)
                    table_spec,                                        # embedding table, VMEM-resident
                    pl.BlockSpec((tile_s, D), lambda t, b: (t, 0)),    # PE tile (FIXED: seq axis, not D)
                ],
                out_specs=pl.BlockSpec((1, tile_s, D), lambda t, b: (b, t, 0)),
            ),
            compiler_params=pltpu.CompilerParams(
                dimension_semantics=("parallel", "parallel"),
                vmem_limit_bytes=vmem_limit,
            ),
        )

    try:
        # Constant-index resident table needs no double buffering.
        single_buf_spec = pl.BlockSpec((v_pad, D), lambda t, b: (0, 0),
                                       pipeline_mode=pl.Buffered(1))
        out = jax.block_until_ready(build(single_buf_spec)(ids_p, emb_p, pe))
    except Exception:
        out = build(pl.BlockSpec((v_pad, D), lambda t, b: (0, 0)))(ids_p, emb_p, pe)

    if s_pad != S:
        out = out[:, :S, :]   # TODO(synk): mask the final partial tile's store instead of slicing
    return out


if __name__ == "__main__":
    key = jax.random.PRNGKey(0)
    k_ids, k_emb = jax.random.split(key)

    B, S = 2, 8
    VOCAB = 32
    D = 128   # HIDDEN_SIZE / d_model in the reference module

    ids = jax.random.randint(k_ids, (B, S), 0, VOCAB, dtype=jnp.int32)
    emb_table = jax.random.normal(k_emb, (VOCAB, D), dtype=jnp.float32)  # nn.Embedding weight
    pe_full = make_positional_encoding(64, D)

    out = source_embedding(ids, emb_table, pe_full)
    out = jax.block_until_ready(out)

    # reference (plain JAX) check
    ref = emb_table[ids] * math.sqrt(D) + pe_full[:S][None, :, :]
    assert out.shape == (B, S, D)
    max_err = float(jnp.max(jnp.abs(out - ref)))
    assert jnp.allclose(out, ref, atol=1e-4, rtol=1e-4), max_err

    print("KERNEL_OK")
</pallas_src>

<mosaic_0001>
module attributes {stable_mosaic.version = 11 : i64} {
  func.func @source_embedding_kernel(%arg0: i32, %arg1: i32, %arg2: memref<2x8xi32, #tpu.memory_space<vmem>>, %arg3: memref<32x128xf32, #tpu.memory_space<vmem>>, %arg4: memref<8x128xf32, #tpu.memory_space<vmem>>, %arg5: memref<1x8x128xf32, #tpu.memory_space<vmem>>) attributes {dimension_semantics = [#tpu.dimension_semantics<parallel>, #tpu.dimension_semantics<parallel>], iteration_bounds = array<i64: 1, 2>, scalar_prefetch = 0 : i64, scratch_operands = 0 : i64, tpu.core_type = #tpu.core_type<tc>, window_params = [{transform_indices = @transform_0, window_bounds = array<i64: 2, 8>}, {pipeline_mode = #tpu.pipeline_mode<synchronous>, transform_indices = @transform_1, window_bounds = array<i64: 32, 128>}, {transform_indices = @transform_2, window_bounds = array<i64: 8, 128>}, {transform_indices = @transform_3, window_bounds = array<i64: 1, 8, 128>}]} {
    %0 = arith.index_cast %arg1 : i32 to index
    %c0 = arith.constant 0 : index
    %1 = vector.load %arg2[%0, %c0] : memref<2x8xi32, #tpu.memory_space<vmem>>, vector<1x8xi32>
    %2 = tpu.iota {dimensions = array<i32: 0>} : vector<32x8xi32>
    %c0_i32 = arith.constant 0 : i32
    %3 = vector.broadcast %c0_i32 : i32 to vector<32x8xi32>
    %4 = arith.addi %2, %3 : vector<32x8xi32>
    %5 = vector.broadcast %1 : vector<1x8xi32> to vector<32x8xi32>
    %6 = arith.cmpi eq, %4, %5 : vector<32x8xi32>
    %cst = arith.constant 1.000000e+00 : f32
    %cst_0 = arith.constant 0.000000e+00 : f32
    %7 = vector.broadcast %cst : f32 to vector<32x8xf32>
    %8 = vector.broadcast %cst_0 : f32 to vector<32x8xf32>
    %9 = arith.select %6, %7, %8 : vector<32x8xi1>, vector<32x8xf32>
    %c0_1 = arith.constant 0 : index
    %c0_2 = arith.constant 0 : index
    %10 = vector.load %arg3[%c0_1, %c0_2] : memref<32x128xf32, #tpu.memory_space<vmem>>, vector<32x128xf32>
    %cst_3 = arith.constant dense<0.000000e+00> : vector<8x128xf32>
    %11 = tpu.matmul %9, %10, %cst_3 {dimension_numbers = #tpu.dot_dimension_numbers<[0], [0], [1], [1], [0, 1, 1, 1], [], []>, precision = #tpu.contract_precision<fp32>} : vector<32x8xf32>, vector<32x128xf32>, vector<8x128xf32> -> vector<8x128xf32>
    %cst_4 = arith.constant 11.3137083 : f32
    %12 = vector.broadcast %cst_4 : f32 to vector<8x128xf32>
    %13 = arith.mulf %11, %12 : vector<8x128xf32>
    %c0_5 = arith.constant 0 : index
    %c0_6 = arith.constant 0 : index
    %14 = vector.load %arg4[%c0_5, %c0_6] : memref<8x128xf32, #tpu.memory_space<vmem>>, vector<8x128xf32>
    %15 = arith.addf %13, %14 : vector<8x128xf32>
    %c0_7 = arith.constant 0 : index
    %c0_8 = arith.constant 0 : index
    %c0_9 = arith.constant 0 : index
    %16 = vector.load %arg5[%c0_7, %c0_8, %c0_9] : memref<1x8x128xf32, #tpu.memory_space<vmem>>, vector<1x8x128xf32>
    %17 = vector.shape_cast %16 : vector<1x8x128xf32> to vector<8x128xf32>
    %18 = vector.shape_cast %15 : vector<8x128xf32> to vector<1x8x128xf32>
    tpu.vector_store %arg5[%c0_7, %c0_8, %c0_9], %18 {strides = array<i32>} : memref<1x8x128xf32, #tpu.memory_space<vmem>>, vector<1x8x128xf32>,
    return
  }
  func.func @transform_0(%arg0: i32, %arg1: i32) -> (i32, i32) {
    %c0_i32 = arith.constant 0 : i32
    %c0_i32_0 = arith.constant 0 : i32
    return %c0_i32, %arg0 : i32, i32
  }
  func.func @transform_1(%arg0: i32, %arg1: i32) -> (i32, i32) {
    %c0_i32 = arith.constant 0 : i32
    %c0_i32_0 = arith.constant 0 : i32
    %c0_i32_1 = arith.constant 0 : i32
    return %c0_i32, %c0_i32_0 : i32, i32
  }
  func.func @transform_2(%arg0: i32, %arg1: i32) -> (i32, i32) {
    %c0_i32 = arith.constant 0 : i32
    %c0_i32_0 = arith.constant 0 : i32
    return %arg0, %c0_i32 : i32, i32
  }
  func.func @transform_3(%arg0: i32, %arg1: i32) -> (i32, i32, i32) {
    %c0_i32 = arith.constant 0 : i32
    %c0_i32_0 = arith.constant 0 : i32
    return %arg1, %arg0, %c0_i32 : i32, i32, i32
  }
}

module attributes {stable_mosaic.version = 11 : i64} {
  func.func @source_embedding_kernel(%arg0: i32, %arg1: i32, %arg2: memref<2x8xi32, #tpu.memory_space<vmem>>, %arg3: memref<32x128xf32, #tpu.memory_space<vmem>>, %arg4: memref<8x128xf32, #tpu.memory_space<vmem>>, %arg5: memref<1x8x128xf32, #tpu.memory_space<vmem>>) attributes {dimension_semantics = [#tpu.dimension_semantics<parallel>, #tpu.dimension_semantics<parallel>], iteration_bounds = array<i64: 1, 2>, scalar_prefetch = 0 : i64, scratch_operands = 0 : i64, tpu.core_type = #tpu.core_type<tc>, window_params = [{transform_indices = @transform_0, window_bounds = array<i64: 2, 8>}, {pipeline_mode = #tpu.pipeline_mode<synchronous>, transform_indices = @transform_1, window_bounds = array<i64: 32, 128>}, {transform_indices = @transform_2, window_bounds = array<i64: 8, 128>}, {transform_indices = @transform_3, window_bounds = array<i64: 1, 8, 128>}]} {
    %0 = arith.index_cast %arg1 : i32 to index
    %c0 = arith.constant 0 : index
    %1 = vector.load %arg2[%0, %c0] : memref<2x8xi32, #tpu.memory_space<vmem>>, vector<1x8xi32>
    %2 = tpu.iota {dimensions = array<i32: 0>} : vector<32x8xi32>
    %c0_i32 = arith.constant 0 : i32
    %3 = vector.broadcast %c0_i32 : i32 to vector<32x8xi32>
    %4 = arith.addi %2, %3 : vector<32x8xi32>
    %5 = vector.broadcast %1 : vector<1x8xi32> to vector<32x8xi32>
    %6 = arith.cmpi eq, %4, %5 : vector<32x8xi32>
    %cst = arith.constant 1.000000e+00 : f32
    %cst_0 = arith.constant 0.000000e+00 : f32
    %7 = vector.broadcast %cst : f32 to vector<32x8xf32>
    %8 = vector.broadcast %cst_0 : f32 to vector<32x8xf32>
    %9 = arith.select %6, %7, %8 : vector<32x8xi1>, vector<32x8xf32>
    %c0_1 = arith.constant 0 : index
    %c0_2 = arith.constant 0 : index
    %10 = vector.load %arg3[%c0_1, %c0_2] : memref<32x128xf32, #tpu.memory_space<vmem>>, vector<32x128xf32>
    %cst_3 = arith.constant dense<0.000000e+00> : vector<8x128xf32>
    %11 = tpu.matmul %9, %10, %cst_3 {dimension_numbers = #tpu.dot_dimension_numbers<[0], [0], [1], [1], [0, 1, 1, 1], [], []>, precision = #tpu.contract_precision<fp32>} : vector<32x8xf32>, vector<32x128xf32>, vector<8x128xf32> -> vector<8x128xf32>
    %cst_4 = arith.constant 11.3137083 : f32
    %12 = vector.broadcast %cst_4 : f32 to vector<8x128xf32>
    %13 = arith.mulf %11, %12 : vector<8x128xf32>
    %c0_5 = arith.constant 0 : index
    %c0_6 = arith.constant 0 : index
    %14 = vector.load %arg4[%c0_5, %c0_6] : memref<8x128xf32, #tpu.memory_space<vmem>>, vector<8x128xf32>
    %15 = arith.addf %13, %14 : vector<8x128xf32>
    %c0_7 = arith.constant 0 : index
    %c0_8 = arith.constant 0 : index
    %c0_9 = arith.constant 0 : index
    %16 = vector.load %arg5[%c0_7, %c0_8, %c0_9] : memref<1x8x128xf32, #tpu.memory_space<vmem>>, vector<1x8x128xf32>
    %17 = vector.shape_cast %16 : vector<1x8x128xf32> to vector<8x128xf32>
    %18 = vector.shape_cast %15 : vector<8x128xf32> to vector<1x8x128xf32>
    tpu.vector_store %arg5[%c0_7, %c0_8, %c0_9], %18 {strides = array<i32>} : memref<1x8x128xf32, #tpu.memory_space<vmem>>, vector<1x8x128xf32>,
    return
  }
  func.func @transform_0(%arg0: i32, %arg1: i32) -> (i32, i32) {
    %c0_i32 = arith.constant 0 : i32
    %c0_i32_0 = arith.constant 0 : i32
    return %c0_i32, %arg0 : i32, i32
  }
  func.func @transform_1(%arg0: i32, %arg1: i32) -> (i32, i32) {
    %c0_i32 = arith.constant 0 : i32
    %c0_i32_0 = arith.constant 0 : i32
    %c0_i32_1 = arith.constant 0 : i32
    return %c0_i32, %c0_i32_0 : i32, i32
  }
  func.func @transform_2(%arg0: i32, %arg1: i32) -> (i32, i32) {
    %c0_i32 = arith.constant 0 : i32
    %c0_i32_0 = arith.constant 0 : i32
    return %arg0, %c0_i32 : i32, i32
  }
  func.func @transform_3(%arg0: i32, %arg1: i32) -> (i32, i32, i32) {
    %c0_i32 = arith.constant 0 : i32
    %c0_i32_0 = arith.constant 0 : i32
    return %arg1, %arg0, %c0_i32 : i32, i32, i32
  }
}

</mosaic_0001>

<llo_original>
// kernel: tpu_custom_call.1
$region0: #{tpu_custom_call.1}
  #allocation0 [shape = 'u32[]', space=smem, size = 0x4, offset = 0x4, fixed_abs, tag = 'smem constant byte address 0x4 - core index']
  #allocation1 [shape = 'u32[144,128]{1,0:T(1,128)}', space=vmem, size = 0x12000, scoped, tag = 'internal scratch']
  %s0 = inlined_call_operand.hbm [shape: s32[2,8], index: 0, kind: input, shape index: {}]
  %s1 = inlined_call_operand.hbm [shape: f32[32,128], index: 1, kind: input, shape index: {}]
  %s2 = inlined_call_operand.hbm [shape: f32[8,128], index: 2, kind: input, shape index: {}]
  %s3 = inlined_call_operand.hbm [shape: f32[2,8,128], index: 3, kind: output, shape index: {}]
  %s4 = sld [smem:[#allocation0]]
  $region57: #{tpu_custom_call.1} parent=0
    _
  %s6 = ssub.s32 1, %s4
  %s7 = scalar_select 0, %s6, %s4
  $region1: #{tpu_custom_call.1} parent=0
    #allocation2 [shape = 'u8[1024]{0}', space=vmem, size = 0x400, scoped, tag = 'input window, operand 0, single buffered']
    #allocation3 [shape = 's32[2]{0}', space=sflag, size = 0x8, scoped, tag = 'scoped memory for tpu_custom_call.1']
    #allocation4 [shape = 's32[2]{0}', space=sflag, size = 0x8, scoped, tag = 'scoped memory for tpu_custom_call.1']
    #allocation5 [shape = 'u8[16384]{0}', space=vmem, size = 0x4000, scoped, tag = 'input window, operand 1, single buffered']
    #allocation6 [shape = 's32[1]{0}', space=sflag, size = 0x4, scoped, tag = 'scoped memory for tpu_custom_call.1']
    #allocation7 [shape = 'u8[4096]{0}', space=vmem, size = 0x1000, scoped, tag = 'input window, operand 2, single buffered']
    #allocation8 [shape = 'u8[8192]{0}', space=vmem, size = 0x2000, scoped, tag = 'output window, operand 0']
    %8 = vsyncpa [#allocation3], 0
    %9 = vsyncpa [#allocation6], 0
    %10 = vsyncpa [#allocation4], 0
    %s11 = scalar_lea.sflag [#allocation4], 1
    %12 = vsyncpa %s11, 0
    loop: start=0, step=1, limit=4
    $region2: #{tpu_custom_call.1} parent=1 // loop_pre_header
      _
    $region3: #{tpu_custom_call.1} parent=1 // loop_header
      %s14 = sphi 0, %s18
      %p15 = scmp.ge.s32.totalorder %s14, 4
      %s21 = sphi 0, %s33
      %s22 = sphi 0, %s29
      %s23 = sphi 0, %s21
      %s24 = sphi 0, %s22
      %s25 = sphi 0, %s23
      %s26 = sphi 0, %s24
      %s36 = sphi 0, %s38
      %s39 = sphi 0, %s36
      %s40 = sphi 0, %s39
      %s56 = sphi 0, %s40
      %s60 = sphi 0, %s60
      %s62 = sphi 0, %s60
      %s63 = sphi 0, %s62
      %s77 = sphi 0, %s63
      %s83 = sphi 0, %s85
      %s86 = sphi 0, %s83
      %s87 = sphi 0, %s86
      %s103 = sphi 0, %s87
      %s111 = sphi 0, %s113
      %s114 = sphi 0, %s111
      %s115 = sphi 0, %s114
      %s131 = sphi 0, %s115
    $region4: #{tpu_custom_call.1} parent=1 // loop_header_branch
      %17 = sbr.rel (%p15) target = $region8
    $region5: #{tpu_custom_call.1} parent=1 // loop_body
      %s19 = ssub.s32 %s14, 1
      %s20 = ssub.s32 %s14, 2
      %s27 = sadd.s32 1, %s22
      %p28 = scmp.ge.s32.totalorder %s27, 2
      %s29 = scalar_select %p28, 0, %s27
      %s30 = sadd.s32 1, %s21
      %s31 = scalar_select %p28, %s30, %s21
      %p32 = scmp.ge.s32.totalorder %s31, 1
      %s33 = scalar_select %p32, 0, %s31
      %s34 = ssub.s32 %s21, %s33
      %p35 = scmp.eq.s32.totalorder %s34, 0
      %s37 = sadd.s32 %s36, 1
      %s38 = scalar_select %p35, %s36, %s37
      %p41 = pneg %p35
      %p42 = scmp.eq.s32.totalorder %s14, 1
      %p43 = por %p41, %p42
      %p44 = scmp.ne.s32.totalorder %s36, %s39
      %p45 = scmp.eq.s32.totalorder %s14, 0
      %p46 = por %p44, %p45
      %p47 = scmp.ne.s32.totalorder %s36, %s39
      %p48 = scmp.eq.s32.totalorder %s19, 1
      %p49 = por %p47, %p48
      %p50 = scmp.ne.s32.totalorder %s39, %s40
      %p51 = scmp.eq.s32.totalorder %s19, 0
      %p52 = por %p50, %p51
      %p53 = scmp.ne.s32.totalorder %s39, %s40
      %p54 = scmp.eq.s32.totalorder %s20, 1
      %p55 = por %p53, %p54
      %p57 = scmp.ne.s32.totalorder %s40, %s56
      %p58 = scmp.eq.s32.totalorder %s20, 0
      %p59 = por %p57, %p58
      %s61 = sadd.s32 %s60, 1
      %p64 = scmp.eq.s32.totalorder %s14, 1
      %p65 = scmp.ne.s32.totalorder %s60, %s62
      %p66 = scmp.eq.s32.totalorder %s14, 0
      %p67 = por %p65, %p66
      %p68 = scmp.ne.s32.totalorder %s60, %s62
      %p69 = scmp.eq.s32.totalorder %s19, 1
      %p70 = por %p68, %p69
      %p71 = scmp.ne.s32.totalorder %s62, %s63
      %p72 = scmp.eq.s32.totalorder %s19, 0
      %p73 = por %p71, %p72
      %p74 = scmp.ne.s32.totalorder %s62, %s63
      %p75 = scmp.eq.s32.totalorder %s20, 1
      %p76 = por %p74, %p75
      %p78 = scmp.ne.s32.totalorder %s63, %s77
      %p79 = scmp.eq.s32.totalorder %s20, 0
      %p80 = por %p78, %p79
      %s81 = ssub.s32 %s21, %s33
      %p82 = scmp.eq.s32.totalorder %s81, 0
      %s84 = sadd.s32 %s83, 1
      %s85 = scalar_select %p82, %s83, %s84
      %p88 = pneg %p82
      %p89 = scmp.eq.s32.totalorder %s14, 1
      %p90 = por %p88, %p89
      %p91 = scmp.ne.s32.totalorder %s83, %s86
      %p92 = scmp.eq.s32.totalorder %s14, 0
      %p93 = por %p91, %p92
      %p94 = scmp.ne.s32.totalorder %s83, %s86
      %p95 = scmp.eq.s32.totalorder %s19, 1
      %p96 = por %p94, %p95
      %p97 = scmp.ne.s32.totalorder %s86, %s87
      %p98 = scmp.eq.s32.totalorder %s19, 0
      %p99 = por %p97, %p98
      %p100 = scmp.ne.s32.totalorder %s86, %s87
      %p101 = scmp.eq.s32.totalorder %s20, 1
      %p102 = por %p100, %p101
      %p104 = scmp.ne.s32.totalorder %s87, %s103
      %p105 = scmp.eq.s32.totalorder %s20, 0
      %p106 = por %p104, %p105
      %s107 = ssub.s32 %s22, %s29
      %s108 = ssub.s32 %s21, %s33
      %s109 = sor.u32 %s107, %s108
      %p110 = scmp.eq.s32.totalorder %s109, 0
      %s112 = sadd.s32 %s111, 1
      %s113 = scalar_select %p110, %s111, %s112
      %p116 = pneg %p110
      %p117 = scmp.eq.s32.totalorder %s14, 1
      %p118 = por %p116, %p117
      %p119 = scmp.ne.s32.totalorder %s111, %s114
      %p120 = scmp.eq.s32.totalorder %s14, 0
      %p121 = por %p119, %p120
      %p122 = scmp.ne.s32.totalorder %s111, %s114
      %p123 = scmp.eq.s32.totalorder %s19, 1
      %p124 = por %p122, %p123
      %p125 = scmp.ne.s32.totalorder %s114, %s115
      %p126 = scmp.eq.s32.totalorder %s19, 0
      %p127 = por %p125, %p126
      %p128 = scmp.ne.s32.totalorder %s114, %s115
      %p129 = scmp.eq.s32.totalorder %s20, 1
      %p130 = por %p128, %p129
      %p132 = scmp.ne.s32.totalorder %s115, %s131
      %p133 = scmp.eq.s32.totalorder %s20, 0
      %p134 = por %p132, %p133
      %p135 = scmp.le.s32.totalorder 1, %s14
      %p136 = scmp.lt.s32.totalorder %s14, 3
      %p137 = pnand %p135, %p136
      %p138 = pneg %p137
      // Predicated region
      $region9: #{tpu_custom_call.1} parent=5 // pred_check
        _
      $region10: #{tpu_custom_call.1} parent=5 // pred_check_branch
        %140 = sbr.rel (%p137) target = $region12
      $region11: #{tpu_custom_call.1} parent=5 // pred_region
        %s141 = ssub.s32 %s14, 1
        // Predicated region
        $region13: #{tpu_custom_call.1} parent=11 // pred_check
          %p142 = pneg %p52
        $region14: #{tpu_custom_call.1} parent=11 // pred_check_branch
          %144 = sbr.rel (%p142) target = $region16
        $region15: #{tpu_custom_call.1} parent=11 // pred_region
          %s146 = ssub.s32 32, 32
          %147 = vsyncadd [#allocation3], %s146
          %s148 = smul.addr %s23, 32
          %s149 = scalar_lea.hbm %s0, %s148
          %s151 = sshll.u32 [#allocation2], 4
          %s152 = int_to_ptr.vmem [resolvable:$true] %s151
          %154 = dma.hbm_to_vmem [thread:$0]  %s149, 32, %s152, [#allocation3]
        $region16: #{tpu_custom_call.1} parent=11 // pred_fallthru
          _
        // Predicated region
        $region17: #{tpu_custom_call.1} parent=11 // pred_check
          %p155 = pneg %p73
        $region18: #{tpu_custom_call.1} parent=11 // pred_check_branch
          %157 = sbr.rel (%p155) target = $region20
        $region19: #{tpu_custom_call.1} parent=11 // pred_region
          %s159 = ssub.s32 512, 512
          %160 = vsyncadd [#allocation6], %s159
          %s161 = sshll.u32 [#allocation5], 4
          %s162 = int_to_ptr.vmem [resolvable:$true] %s161
          %167 = dma.hbm_to_vmem [thread:$0]  %s1, 512, %s162, [#allocation6], 128, 128, 8
        $region20: #{tpu_custom_call.1} parent=11 // pred_fallthru
          _
        // Predicated region
        $region21: #{tpu_custom_call.1} parent=11 // pred_check
          %p168 = pneg %p99
        $region22: #{tpu_custom_call.1} parent=11 // pred_check_branch
          %170 = sbr.rel (%p168) target = $region24
        $region23: #{tpu_custom_call.1} parent=11 // pred_region
          %s172 = ssub.s32 128, 128
          %173 = vsyncadd [#allocation6], %s172
          %s174 = smul.addr %s23, 128
          %s175 = scalar_lea.hbm %s2, %s174
          %s177 = sshll.u32 [#allocation7], 4
          %s178 = int_to_ptr.vmem [resolvable:$true] %s177
          %180 = dma.hbm_to_vmem [thread:$0]  %s175, 128, %s178, [#allocation6]
        $region24: #{tpu_custom_call.1} parent=11 // pred_fallthru
          _
      $region12: #{tpu_custom_call.1} parent=5 // pred_fallthru
        _
      %p181 = scmp.lt.s32.totalorder %s14, 2
      // Predicated region
      $region25: #{tpu_custom_call.1} parent=5 // pred_check
        %p182 = pneg %p181
      $region26: #{tpu_custom_call.1} parent=5 // pred_check_branch
        %184 = sbr.rel (%p182) target = $region28
      $region27: #{tpu_custom_call.1} parent=5 // pred_region
        _
      $region28: #{tpu_custom_call.1} parent=5 // pred_fallthru
        _
      %p185 = scmp.le.s32.totalorder 1, %s14
      %p186 = scmp.lt.s32.totalorder %s14, 3
      %p187 = pnand %p185, %p186
      %p188 = pneg %p187
      // Predicated region
      $region29: #{tpu_custom_call.1} parent=5 // pred_check
        _
      $region30: #{tpu_custom_call.1} parent=5 // pred_check_branch
        %190 = sbr.rel (%p187) target = $region32
      $region31: #{tpu_custom_call.1} parent=5 // pred_region
        %s191 = ssub.s32 %s14, 1
        // Predicated region
        $region33: #{tpu_custom_call.1} parent=31 // pred_check
          %p192 = pneg %p52
        $region34: #{tpu_custom_call.1} parent=31 // pred_check_branch
          %194 = sbr.rel (%p192) target = $region36
        $region35: #{tpu_custom_call.1} parent=31 // pred_region
          %195 = dma.done [#allocation3], 32
        $region36: #{tpu_custom_call.1} parent=31 // pred_fallthru
          _
        // Predicated region
        $region37: #{tpu_custom_call.1} parent=31 // pred_check
          %p196 = pneg %p73
        $region38: #{tpu_custom_call.1} parent=31 // pred_check_branch
          %198 = sbr.rel (%p196) target = $region40
        $region39: #{tpu_custom_call.1} parent=31 // pred_region
          %199 = dma.done [#allocation6], 512
        $region40: #{tpu_custom_call.1} parent=31 // pred_fallthru
          _
        // Predicated region
        $region41: #{tpu_custom_call.1} parent=31 // pred_check
          %p200 = pneg %p99
        $region42: #{tpu_custom_call.1} parent=31 // pred_check_branch
          %202 = sbr.rel (%p200) target = $region44
        $region43: #{tpu_custom_call.1} parent=31 // pred_region
          %203 = dma.done [#allocation6], 128
        $region44: #{tpu_custom_call.1} parent=31 // pred_fallthru
          _
        %p204 = pneg %p52
        %p205 = pneg %p49
        %p206 = pneg %p73
        %p207 = pneg %p70
        %p208 = pneg %p99
        %p209 = pneg %p96
        %p210 = pneg %p127
        %p211 = pneg %p124
        %s212 = sand.u32 %s114, 1
        %s213 = scalar_lea.sflag [#allocation4], %s212
        %s214 = sand.u32 %s114, 1
        %s215 = smul.addr %s214, 8
        %s216 = scalar_lea.vmem [#allocation8], %s215
        %s217 = scalar_lea.vmem [#allocation2], %s24
        %v218 = vld [vmem:[%s217] sm:$0x1]
        %v219 = vlaneseq
        %v220 = vshrl.u32 %v219, 7
        %v221 = vadd.s32 %v220, 8
        %v222 = vadd.s32 %v220, 16
        %v223 = vadd.s32 %v220, 24
        %v224 = vlaneseq
        %v225 = vshrl.u32 %v224, 7
        %v226 = vsub.s32 0, %v225
        %v227 = vrot.slane %v218, %v226
        %vm228 = vcmp.eq.s32.totalorder %v220, %v227
        %vm229 = vcmp.eq.s32.totalorder %v221, %v227
        %vm230 = vcmp.eq.s32.totalorder %v222, %v227
        %vm231 = vcmp.eq.s32.totalorder %v223, %v227
        %v232 = vsel %vm228, 1.0, 0.0
        %v233 = vsel %vm229, 1.0, 0.0
        %v234 = vsel %vm230, 1.0, 0.0
        %v235 = vsel %vm231, 1.0, 0.0
        %v236 = vld [vmem:[#allocation5] sm:$0xff]
        %v237 = vld [vmem:[#allocation5 + $0x8] sm:$0xff]
        %v238 = vld [vmem:[#allocation5 + $0x10] sm:$0xff]
        %v239 = vld [vmem:[#allocation5 + $0x18] sm:$0xff]
        %240 = vxpose.xlu0.b32.start [1/16] %v232, 128
        %241 = vxpose.xlu0.b32.cont [2/16] %v233, 128
        %242 = vxpose.xlu0.b32.cont [3/16] %v234, 128
        %243 = vxpose.xlu0.b32.cont [4/16] %v235, 128
        %244 = vxpose.xlu0.b32.cont [5/16] 0.0, 128
        %245 = vxpose.xlu0.b32.cont [6/16] 0.0, 128
        %246 = vxpose.xlu0.b32.cont [7/16] 0.0, 128
        %247 = vxpose.xlu0.b32.cont [8/16] 0.0, 128
        %248 = vxpose.xlu0.b32.cont [9/16] 0.0, 128
        %249 = vxpose.xlu0.b32.cont [10/16] 0.0, 128
        %250 = vxpose.xlu0.b32.cont [11/16] 0.0, 128
        %251 = vxpose.xlu0.b32.cont [12/16] 0.0, 128
        %252 = vxpose.xlu0.b32.cont [13/16] 0.0, 128
        %253 = vxpose.xlu0.b32.cont [14/16] 0.0, 128
        %254 = vxpose.xlu0.b32.cont [15/16] 0.0, 128
        %255 = vxpose.xlu0.b32.end [16/16] 0.0, 128
        %v256 = vpop.trf.xlu0
        %v257 = vpop.trf.xlu0
        %v258 = vpop.trf.xlu0
        %v259 = vpop.trf.xlu0
        %v260 = vpop.trf.xlu0
        %v261 = vpop.trf.xlu0
        %v262 = vpop.trf.xlu0
        %v263 = vpop.trf.xlu0
        %v264 = vpop.trf.xlu0
        %v265 = vpop.trf.xlu0
        %v266 = vpop.trf.xlu0
        %v267 = vpop.trf.xlu0
        %v268 = vpop.trf.xlu0
        %v269 = vpop.trf.xlu0
        %v270 = vpop.trf.xlu0
        %v271 = vpop.trf.xlu0
        %vm272 = vcmask 261120
        %v274 = vsel %vm272, %v256, 0
        %276 = vmatprep.subr.mxu0 0.0
        %v277 = vand.u32 %v236, 4294901760
        %278 = vmatpush1.msra.mxu0 %v277
        %279 = vmatprep.subr.mxu0 0.0
        %v280 = vand.u32 %v237, 4294901760
        %281 = vmatpush1.msra.mxu0 %v280
        %282 = vmatprep.subr.mxu0 0.0
        %v283 = vand.u32 %v238, 4294901760
        %284 = vmatpush1.msra.mxu0 %v283
        %285 = vmatprep.subr.mxu0 0.0
        %v286 = vand.u32 %v239, 4294901760
        %287 = vmatpush1.msra.mxu0 %v286
        %288 = vmatprep.subr.mxu0 0.0
        %289 = vmatpush1.msra.mxu0 0.0
        %290 = vmatprep.subr.mxu0 0.0
        %291 = vmatpush1.msra.mxu0 0.0
        %292 = vmatprep.subr.mxu0 0.0
        %293 = vmatpush1.msra.mxu0 0.0
        %294 = vmatprep.subr.mxu0 0.0
        %295 = vmatpush1.msra.mxu0 0.0
        %296 = vmatprep.subr.mxu0 0.0
        %297 = vmatpush1.msra.mxu0 0.0
        %298 = vmatprep.subr.mxu0 0.0
        %299 = vmatpush1.msra.mxu0 0.0
        %300 = vmatprep.subr.mxu0 0.0
        %301 = vmatpush1.msra.mxu0 0.0
        %302 = vmatprep.subr.mxu0 0.0
        %303 = vmatpush1.msra.mxu0 0.0
        %304 = vmatprep.subr.mxu0 0.0
        %305 = vmatpush1.msra.mxu0 0.0
        %306 = vmatprep.subr.mxu0 0.0
        %307 = vmatpush1.msra.mxu0 0.0
        %308 = vmatprep.subr.mxu0 0.0
        %309 = vmatpush1.msra.mxu0 0.0
        %310 = vmatprep.subr.mxu0 0.0
        %311 = vmatpush1.msra.mxu0 0.0
        %312 = vmatprep.subr.mxu0 0.0
        %313 = vmatpush1.msra.mxu0 0.0
        %314 = vmatprep.subr.mxu0 0.0
        %315 = vmatpush1.msra.mxu0 0.0
        %316 = vmatprep.subr.mxu0 0.0
        %317 = vmatpush1.msra.mxu0 0.0
        %318 = vmatprep.subr.mxu0 0.0
        %319 = vmatpush1.msra.mxu0 0.0
        %320 = vmatprep.subr.mxu0 0.0
        %321 = vmatpush1.msra.mxu0 0.0
        %322 = vmatprep.subr.mxu0 0.0
        %323 = vmatpush1.msra.mxu0 0.0
        %324 = vmatprep.subr.mxu0 0.0
        %325 = vmatpush1.msra.mxu0 0.0
        %326 = vmatprep.subr.mxu0 0.0
        %327 = vmatpush1.msra.mxu0 0.0
        %328 = vmatprep.subr.mxu0 0.0
        %329 = vmatpush1.msra.mxu0 0.0
        %330 = vmatprep.subr.mxu0 0.0
        %331 = vmatpush1.msra.mxu0 0.0
        %332 = vmatprep.subr.mxu0 0.0
        %333 = vmatpush1.msra.mxu0 0.0
        %334 = vmatprep.subr.mxu0 0.0
        %335 = vmatpush1.msra.mxu0 0.0
        %336 = vmatprep.subr.mxu0 0.0
        %337 = vmatpush1.msra.mxu0 0.0
        %338 = vmatprep.subr.mxu0 0.0
        %339 = vmatpush1.msra.mxu0 0.0
        %340 = vmatprep.subr.mxu0 0.0
        %341 = vmatpush1.msra.mxu0 0.0
        %342 = vmatprep.subr.mxu0 0.0
        %343 = vmatpush1.msra.mxu0 0.0
        %344 = vmatprep.mubr.f32.mxu0 0.0
        %v345 = vand.u32 %v274, 4294901760
        %v346 = vsub.f32 %v274, %v345
        %v347 = vand.u32 %v346, 4294901760
        %v348 = vsub.f32 %v346, %v347
        %v349 = vand.u32 %v348, 4294901760
        %350 = vmatmul.mubr.f32.gmra.mrb[0].mxu0 %v349
        %v351 = vpop.f32.mrb[0].mxu0
        %v352 = vadd.f32 0.0, %v351
        %v353 = vpop.f32.mrb[0].mxu0
        %354 = vdwg.mxu0
        %355 = vmatprep.subr.mxu0 0.0
        %v356 = vand.u32 %v236, 4294901760
        %v357 = vsub.f32 %v236, %v356
        %v358 = vand.u32 %v357, 4294901760
        %v359 = vsub.f32 %v357, %v358
        %v360 = vand.u32 %v359, 4294901760
        %361 = vmatpush1.msra.mxu0 %v360
        %362 = vmatprep.subr.mxu0 0.0
        %v363 = vand.u32 %v237, 4294901760
        %v364 = vsub.f32 %v237, %v363
        %v365 = vand.u32 %v364, 4294901760
        %v366 = vsub.f32 %v364, %v365
        %v367 = vand.u32 %v366, 4294901760
        %368 = vmatpush1.msra.mxu0 %v367
        %369 = vmatprep.subr.mxu0 0.0
        %v370 = vand.u32 %v238, 4294901760
        %v371 = vsub.f32 %v238, %v370
        %v372 = vand.u32 %v371, 4294901760
        %v373 = vsub.f32 %v371, %v372
        %v374 = vand.u32 %v373, 4294901760
        %375 = vmatpush1.msra.mxu0 %v374
        %376 = vmatprep.subr.mxu0 0.0
        %v377 = vand.u32 %v239, 4294901760
        %v378 = vsub.f32 %v239, %v377
        %v379 = vand.u32 %v378, 4294901760
        %v380 = vsub.f32 %v378, %v379
        %v381 = vand.u32 %v380, 4294901760
        %382 = vmatpush1.msra.mxu0 %v381
        %383 = vmatprep.subr.mxu0 0.0
        %384 = vmatpush1.msra.mxu0 0.0
        %385 = vmatprep.subr.mxu0 0.0
        %386 = vmatpush1.msra.mxu0 0.0
        %387 = vmatprep.subr.mxu0 0.0
        %388 = vmatpush1.msra.mxu0 0.0
        %389 = vmatprep.subr.mxu0 0.0
        %390 = vmatpush1.msra.mxu0 0.0
        %391 = vmatprep.subr.mxu0 0.0
        %392 = vmatpush1.msra.mxu0 0.0
        %393 = vmatprep.subr.mxu0 0.0
        %394 = vmatpush1.msra.mxu0 0.0
        %395 = vmatprep.subr.mxu0 0.0
        %396 = vmatpush1.msra.mxu0 0.0
        %397 = vmatprep.subr.mxu0 0.0
        %398 = vmatpush1.msra.mxu0 0.0
        %399 = vmatprep.subr.mxu0 0.0
        %400 = vmatpush1.msra.mxu0 0.0
        %401 = vmatprep.subr.mxu0 0.0
        %402 = vmatpush1.msra.mxu0 0.0
        %403 = vmatprep.subr.mxu0 0.0
        %404 = vmatpush1.msra.mxu0 0.0
        %405 = vmatprep.subr.mxu0 0.0
        %406 = vmatpush1.msra.mxu0 0.0
        %407 = vmatprep.subr.mxu0 0.0
        %408 = vmatpush1.msra.mxu0 0.0
        %409 = vmatprep.subr.mxu0 0.0
        %410 = vmatpush1.msra.mxu0 0.0
        %411 = vmatprep.subr.mxu0 0.0
        %412 = vmatpush1.msra.mxu0 0.0
        %413 = vmatprep.subr.mxu0 0.0
        %414 = vmatpush1.msra.mxu0 0.0
        %415 = vmatprep.subr.mxu0 0.0
        %416 = vmatpush1.msra.mxu0 0.0
        %417 = vmatprep.subr.mxu0 0.0
        %418 = vmatpush1.msra.mxu0 0.0
        %419 = vmatprep.subr.mxu0 0.0
        %420 = vmatpush1.msra.mxu0 0.0
        %421 = vmatprep.subr.mxu0 0.0
        %422 = vmatpush1.msra.mxu0 0.0
        %423 = vmatprep.subr.mxu0 0.0
        %424 = vmatpush1.msra.mxu0 0.0
        %425 = vmatprep.subr.mxu0 0.0
        %426 = vmatpush1.msra.mxu0 0.0
        %427 = vmatprep.subr.mxu0 0.0
        %428 = vmatpush1.msra.mxu0 0.0
        %429 = vmatprep.subr.mxu0 0.0
        %430 = vmatpush1.msra.mxu0 0.0
        %431 = vmatprep.subr.mxu0 0.0
        %432 = vmatpush1.msra.mxu0 0.0
        %433 = vmatprep.subr.mxu0 0.0
        %434 = vmatpush1.msra.mxu0 0.0
        %435 = vmatprep.subr.mxu0 0.0
        %436 = vmatpush1.msra.mxu0 0.0
        %437 = vmatprep.subr.mxu0 0.0
        %438 = vmatpush1.msra.mxu0 0.0
        %439 = vmatprep.mubr.f32.mxu0 0.0
        %v440 = vand.u32 %v274, 4294901760
        %441 = vmatmul.mubr.f32.gmra.mrb[0].mxu0 %v440
        %v442 = vpop.f32.mrb[0].mxu0
        %v443 = vadd.f32 %v352, %v442
        %v444 = vpop.f32.mrb[0].mxu0
        %445 = vdwg.mxu0
        %446 = vmatprep.subr.mxu0 0.0
        %v447 = vand.u32 %v236, 4294901760
        %v448 = vsub.f32 %v236, %v447
        %449 = vmatpush1.msra.mxu0 %v448
        %450 = vmatprep.subr.mxu0 0.0
        %v451 = vand.u32 %v237, 4294901760
        %v452 = vsub.f32 %v237, %v451
        %453 = vmatpush1.msra.mxu0 %v452
        %454 = vmatprep.subr.mxu0 0.0
        %v455 = vand.u32 %v238, 4294901760
        %v456 = vsub.f32 %v238, %v455
        %457 = vmatpush1.msra.mxu0 %v456
        %458 = vmatprep.subr.mxu0 0.0
        %v459 = vand.u32 %v239, 4294901760
        %v460 = vsub.f32 %v239, %v459
        %461 = vmatpush1.msra.mxu0 %v460
        %462 = vmatprep.subr.mxu0 0.0
        %463 = vmatpush1.msra.mxu0 0.0
        %464 = vmatprep.subr.mxu0 0.0
        %465 = vmatpush1.msra.mxu0 0.0
        %466 = vmatprep.subr.mxu0 0.0
        %467 = vmatpush1.msra.mxu0 0.0
        %468 = vmatprep.subr.mxu0 0.0
        %469 = vmatpush1.msra.mxu0 0.0
        %470 = vmatprep.subr.mxu0 0.0
        %471 = vmatpush1.msra.mxu0 0.0
        %472 = vmatprep.subr.mxu0 0.0
        %473 = vmatpush1.msra.mxu0 0.0
        %474 = vmatprep.subr.mxu0 0.0
        %475 = vmatpush1.msra.mxu0 0.0
        %476 = vmatprep.subr.mxu0 0.0
        %477 = vmatpush1.msra.mxu0 0.0
        %478 = vmatprep.subr.mxu0 0.0
        %479 = vmatpush1.msra.mxu0 0.0
        %480 = vmatprep.subr.mxu0 0.0
        %481 = vmatpush1.msra.mxu0 0.0
        %482 = vmatprep.subr.mxu0 0.0
        %483 = vmatpush1.msra.mxu0 0.0
        %484 = vmatprep.subr.mxu0 0.0
        %485 = vmatpush1.msra.mxu0 0.0
        %486 = vmatprep.subr.mxu0 0.0
        %487 = vmatpush1.msra.mxu0 0.0
        %488 = vmatprep.subr.mxu0 0.0
        %489 = vmatpush1.msra.mxu0 0.0
        %490 = vmatprep.subr.mxu0 0.0
        %491 = vmatpush1.msra.mxu0 0.0
        %492 = vmatprep.subr.mxu0 0.0
        %493 = vmatpush1.msra.mxu0 0.0
        %494 = vmatprep.subr.mxu0 0.0
        %495 = vmatpush1.msra.mxu0 0.0
        %496 = vmatprep.subr.mxu0 0.0
        %497 = vmatpush1.msra.mxu0 0.0
        %498 = vmatprep.subr.mxu0 0.0
        %499 = vmatpush1.msra.mxu0 0.0
        %500 = vmatprep.subr.mxu0 0.0
        %501 = vmatpush1.msra.mxu0 0.0
        %502 = vmatprep.subr.mxu0 0.0
        %503 = vmatpush1.msra.mxu0 0.0
        %504 = vmatprep.subr.mxu0 0.0
        %505 = vmatpush1.msra.mxu0 0.0
        %506 = vmatprep.subr.mxu0 0.0
        %507 = vmatpush1.msra.mxu0 0.0
        %508 = vmatprep.subr.mxu0 0.0
        %509 = vmatpush1.msra.mxu0 0.0
        %510 = vmatprep.subr.mxu0 0.0
        %511 = vmatpush1.msra.mxu0 0.0
        %512 = vmatprep.subr.mxu0 0.0
        %513 = vmatpush1.msra.mxu0 0.0
        %514 = vmatprep.subr.mxu0 0.0
        %515 = vmatpush1.msra.mxu0 0.0
        %516 = vmatprep.subr.mxu0 0.0
        %517 = vmatpush1.msra.mxu0 0.0
        %518 = vmatprep.mubr.f32.mxu0 0.0
        %v519 = vand.u32 %v274, 4294901760
        %v520 = vsub.f32 %v274, %v519
        %521 = vmatmul.mubr.f32.gmra.mrb[0].mxu0 %v520
        %v522 = vpop.f32.mrb[0].mxu0
        %v523 = vadd.f32 %v443, %v522
        %v524 = vpop.f32.mrb[0].mxu0
        %525 = vdwg.mxu0
        %526 = vmatprep.subr.mxu0 0.0
        %v527 = vand.u32 %v236, 4294901760
        %528 = vmatpush1.msra.mxu0 %v527
        %529 = vmatprep.subr.mxu0 0.0
        %v530 = vand.u32 %v237, 4294901760
        %531 = vmatpush1.msra.mxu0 %v530
        %532 = vmatprep.subr.mxu0 0.0
        %v533 = vand.u32 %v238, 4294901760
        %534 = vmatpush1.msra.mxu0 %v533
        %535 = vmatprep.subr.mxu0 0.0
        %v536 = vand.u32 %v239, 4294901760
        %537 = vmatpush1.msra.mxu0 %v536
        %538 = vmatprep.subr.mxu0 0.0
        %539 = vmatpush1.msra.mxu0 0.0
        %540 = vmatprep.subr.mxu0 0.0
        %541 = vmatpush1.msra.mxu0 0.0
        %542 = vmatprep.subr.mxu0 0.0
        %543 = vmatpush1.msra.mxu0 0.0
        %544 = vmatprep.subr.mxu0 0.0
        %545 = vmatpush1.msra.mxu0 0.0
        %546 = vmatprep.subr.mxu0 0.0
        %547 = vmatpush1.msra.mxu0 0.0
        %548 = vmatprep.subr.mxu0 0.0
        %549 = vmatpush1.msra.mxu0 0.0
        %550 = vmatprep.subr.mxu0 0.0
        %551 = vmatpush1.msra.mxu0 0.0
        %552 = vmatprep.subr.mxu0 0.0
        %553 = vmatpush1.msra.mxu0 0.0
        %554 = vmatprep.subr.mxu0 0.0
        %555 = vmatpush1.msra.mxu0 0.0
        %556 = vmatprep.subr.mxu0 0.0
        %557 = vmatpush1.msra.mxu0 0.0
        %558 = vmatprep.subr.mxu0 0.0
        %559 = vmatpush1.msra.mxu0 0.0
        %560 = vmatprep.subr.mxu0 0.0
        %561 = vmatpush1.msra.mxu0 0.0
        %562 = vmatprep.subr.mxu0 0.0
        %563 = vmatpush1.msra.mxu0 0.0
        %564 = vmatprep.subr.mxu0 0.0
        %565 = vmatpush1.msra.mxu0 0.0
        %566 = vmatprep.subr.mxu0 0.0
        %567 = vmatpush1.msra.mxu0 0.0
        %568 = vmatprep.subr.mxu0 0.0
        %569 = vmatpush1.msra.mxu0 0.0
        %570 = vmatprep.subr.mxu0 0.0
        %571 = vmatpush1.msra.mxu0 0.0
        %572 = vmatprep.subr.mxu0 0.0
        %573 = vmatpush1.msra.mxu0 0.0
        %574 = vmatprep.subr.mxu0 0.0
        %575 = vmatpush1.msra.mxu0 0.0
        %576 = vmatprep.subr.mxu0 0.0
        %577 = vmatpush1.msra.mxu0 0.0
        %578 = vmatprep.subr.mxu0 0.0
        %579 = vmatpush1.msra.mxu0 0.0
        %580 = vmatprep.subr.mxu0 0.0
        %581 = vmatpush1.msra.mxu0 0.0
        %582 = vmatprep.subr.mxu0 0.0
        %583 = vmatpush1.msra.mxu0 0.0
        %584 = vmatprep.subr.mxu0 0.0
        %585 = vmatpush1.msra.mxu0 0.0
        %586 = vmatprep.subr.mxu0 0.0
        %587 = vmatpush1.msra.mxu0 0.0
        %588 = vmatprep.subr.mxu0 0.0
        %589 = vmatpush1.msra.mxu0 0.0
        %590 = vmatprep.subr.mxu0 0.0
        %591 = vmatpush1.msra.mxu0 0.0
        %592 = vmatprep.subr.mxu0 0.0
        %593 = vmatpush1.msra.mxu0 0.0
        %594 = vmatprep.mubr.f32.mxu0 0.0
        %v595 = vand.u32 %v274, 4294901760
        %v596 = vsub.f32 %v274, %v595
        %v597 = vand.u32 %v596, 4294901760
        %598 = vmatmul.mubr.f32.gmra.mrb[0].mxu0 %v597
        %v599 = vpop.f32.mrb[0].mxu0
        %v600 = vadd.f32 %v523, %v599
        %v601 = vpop.f32.mrb[0].mxu0
        %602 = vdwg.mxu0
        %603 = vmatprep.subr.mxu0 0.0
        %v604 = vand.u32 %v236, 4294901760
        %v605 = vsub.f32 %v236, %v604
        %v606 = vand.u32 %v605, 4294901760
        %607 = vmatpush1.msra.mxu0 %v606
        %608 = vmatprep.subr.mxu0 0.0
        %v609 = vand.u32 %v237, 4294901760
        %v610 = vsub.f32 %v237, %v609
        %v611 = vand.u32 %v610, 4294901760
        %612 = vmatpush1.msra.mxu0 %v611
        %613 = vmatprep.subr.mxu0 0.0
        %v614 = vand.u32 %v238, 4294901760
        %v615 = vsub.f32 %v238, %v614
        %v616 = vand.u32 %v615, 4294901760
        %617 = vmatpush1.msra.mxu0 %v616
        %618 = vmatprep.subr.mxu0 0.0
        %v619 = vand.u32 %v239, 4294901760
        %v620 = vsub.f32 %v239, %v619
        %v621 = vand.u32 %v620, 4294901760
        %622 = vmatpush1.msra.mxu0 %v621
        %623 = vmatprep.subr.mxu0 0.0
        %624 = vmatpush1.msra.mxu0 0.0
        %625 = vmatprep.subr.mxu0 0.0
        %626 = vmatpush1.msra.mxu0 0.0
        %627 = vmatprep.subr.mxu0 0.0
        %628 = vmatpush1.msra.mxu0 0.0
        %629 = vmatprep.subr.mxu0 0.0
        %630 = vmatpush1.msra.mxu0 0.0
        %631 = vmatprep.subr.mxu0 0.0
        %632 = vmatpush1.msra.mxu0 0.0
        %633 = vmatprep.subr.mxu0 0.0
        %634 = vmatpush1.msra.mxu0 0.0
        %635 = vmatprep.subr.mxu0 0.0
        %636 = vmatpush1.msra.mxu0 0.0
        %637 = vmatprep.subr.mxu0 0.0
        %638 = vmatpush1.msra.mxu0 0.0
        %639 = vmatprep.subr.mxu0 0.0
        %640 = vmatpush1.msra.mxu0 0.0
        %641 = vmatprep.subr.mxu0 0.0
        %642 = vmatpush1.msra.mxu0 0.0
        %643 = vmatprep.subr.mxu0 0.0
        %644 = vmatpush1.msra.mxu0 0.0
        %645 = vmatprep.subr.mxu0 0.0
        %646 = vmatpush1.msra.mxu0 0.0
        %647 = vmatprep.subr.mxu0 0.0
        %648 = vmatpush1.msra.mxu0 0.0
        %649 = vmatprep.subr.mxu0 0.0
        %650 = vmatpush1.msra.mxu0 0.0
        %651 = vmatprep.subr.mxu0 0.0
        %652 = vmatpush1.msra.mxu0 0.0
        %653 = vmatprep.subr.mxu0 0.0
        %654 = vmatpush1.msra.mxu0 0.0
        %655 = vmatprep.subr.mxu0 0.0
        %656 = vmatpush1.msra.mxu0 0.0
        %657 = vmatprep.subr.mxu0 0.0
        %658 = vmatpush1.msra.mxu0 0.0
        %659 = vmatprep.subr.mxu0 0.0
        %660 = vmatpush1.msra.mxu0 0.0
        %661 = vmatprep.subr.mxu0 0.0
        %662 = vmatpush1.msra.mxu0 0.0
        %663 = vmatprep.subr.mxu0 0.0
        %664 = vmatpush1.msra.mxu0 0.0
        %665 = vmatprep.subr.mxu0 0.0
        %666 = vmatpush1.msra.mxu0 0.0
        %667 = vmatprep.subr.mxu0 0.0
        %668 = vmatpush1.msra.mxu0 0.0
        %669 = vmatprep.subr.mxu0 0.0
        %670 = vmatpush1.msra.mxu0 0.0
        %671 = vmatprep.subr.mxu0 0.0
        %672 = vmatpush1.msra.mxu0 0.0
        %673 = vmatprep.subr.mxu0 0.0
        %674 = vmatpush1.msra.mxu0 0.0
        %675 = vmatprep.subr.mxu0 0.0
        %676 = vmatpush1.msra.mxu0 0.0
        %677 = vmatprep.subr.mxu0 0.0
        %678 = vmatpush1.msra.mxu0 0.0
        %679 = vmatprep.mubr.f32.mxu0 0.0
        %v680 = vand.u32 %v274, 4294901760
        %681 = vmatmul.mubr.f32.gmra.mrb[0].mxu0 %v680
        %v682 = vpop.f32.mrb[0].mxu0
        %v683 = vadd.f32 %v600, %v682
        %v684 = vpop.f32.mrb[0].mxu0
        %685 = vdwg.mxu0
        %686 = vmatprep.subr.mxu0 0.0
        %v687 = vand.u32 %v236, 4294901760
        %688 = vmatpush1.msra.mxu0 %v687
        %689 = vmatprep.subr.mxu0 0.0
        %v690 = vand.u32 %v237, 4294901760
        %691 = vmatpush1.msra.mxu0 %v690
        %692 = vmatprep.subr.mxu0 0.0
        %v693 = vand.u32 %v238, 4294901760
        %694 = vmatpush1.msra.mxu0 %v693
        %695 = vmatprep.subr.mxu0 0.0
        %v696 = vand.u32 %v239, 4294901760
        %697 = vmatpush1.msra.mxu0 %v696
        %698 = vmatprep.subr.mxu0 0.0
        %699 = vmatpush1.msra.mxu0 0.0
        %700 = vmatprep.subr.mxu0 0.0
        %701 = vmatpush1.msra.mxu0 0.0
        %702 = vmatprep.subr.mxu0 0.0
        %703 = vmatpush1.msra.mxu0 0.0
        %704 = vmatprep.subr.mxu0 0.0
        %705 = vmatpush1.msra.mxu0 0.0
        %706 = vmatprep.subr.mxu0 0.0
        %707 = vmatpush1.msra.mxu0 0.0
        %708 = vmatprep.subr.mxu0 0.0
        %709 = vmatpush1.msra.mxu0 0.0
        %710 = vmatprep.subr.mxu0 0.0
        %711 = vmatpush1.msra.mxu0 0.0
        %712 = vmatprep.subr.mxu0 0.0
        %713 = vmatpush1.msra.mxu0 0.0
        %714 = vmatprep.subr.mxu0 0.0
        %715 = vmatpush1.msra.mxu0 0.0
        %716 = vmatprep.subr.mxu0 0.0
        %717 = vmatpush1.msra.mxu0 0.0
        %718 = vmatprep.subr.mxu0 0.0
        %719 = vmatpush1.msra.mxu0 0.0
        %720 = vmatprep.subr.mxu0 0.0
        %721 = vmatpush1.msra.mxu0 0.0
        %722 = vmatprep.subr.mxu0 0.0
        %723 = vmatpush1.msra.mxu0 0.0
        %724 = vmatprep.subr.mxu0 0.0
        %725 = vmatpush1.msra.mxu0 0.0
        %726 = vmatprep.subr.mxu0 0.0
        %727 = vmatpush1.msra.mxu0 0.0
        %728 = vmatprep.subr.mxu0 0.0
        %729 = vmatpush1.msra.mxu0 0.0
        %730 = vmatprep.subr.mxu0 0.0
        %731 = vmatpush1.msra.mxu0 0.0
        %732 = vmatprep.subr.mxu0 0.0
        %733 = vmatpush1.msra.mxu0 0.0
        %734 = vmatprep.subr.mxu0 0.0
        %735 = vmatpush1.msra.mxu0 0.0
        %736 = vmatprep.subr.mxu0 0.0
        %737 = vmatpush1.msra.mxu0 0.0
        %738 = vmatprep.subr.mxu0 0.0
        %739 = vmatpush1.msra.mxu0 0.0
        %740 = vmatprep.subr.mxu0 0.0
        %741 = vmatpush1.msra.mxu0 0.0
        %742 = vmatprep.subr.mxu0 0.0
        %743 = vmatpush1.msra.mxu0 0.0
        %744 = vmatprep.subr.mxu0 0.0
        %745 = vmatpush1.msra.mxu0 0.0
        %746 = vmatprep.subr.mxu0 0.0
        %747 = vmatpush1.msra.mxu0 0.0
        %748 = vmatprep.subr.mxu0 0.0
        %749 = vmatpush1.msra.mxu0 0.0
        %750 = vmatprep.subr.mxu0 0.0
        %751 = vmatpush1.msra.mxu0 0.0
        %752 = vmatprep.subr.mxu0 0.0
        %753 = vmatpush1.msra.mxu0 0.0
        %754 = vmatprep.mubr.f32.mxu0 0.0
        %v755 = vand.u32 %v274, 4294901760
        %756 = vmatmul.mubr.f32.gmra.mrb[0].mxu0 %v755
        %v757 = vpop.f32.mrb[0].mxu0
        %v758 = vadd.f32 %v683, %v757
        %v759 = vpop.f32.mrb[0].mxu0
        %760 = vdwg.mxu0
        %v761 = vmul.f32 %v758, 11.313708
        %v762 = vld [vmem:[#allocation7] sm:$0xff]
        %v763 = vadd.f32 %v761, %v762
        %764 = vst [vmem:[%s216] sm:$0xff] %v763
        %s765 = sand.u32 %s114, 1
        %s766 = scalar_lea.sflag [#allocation4], %s765
        %s767 = sand.u32 %s114, 1
        %s768 = smul.addr %s767, 8
        %s769 = scalar_lea.vmem [#allocation8], %s768
        // Predicated region
        $region45: #{tpu_custom_call.1} parent=31 // pred_check
          %p770 = pneg %p124
        $region46: #{tpu_custom_call.1} parent=31 // pred_check_branch
          %772 = sbr.rel (%p770) target = $region48
        $region47: #{tpu_custom_call.1} parent=31 // pred_region
          %s774 = ssub.s32 128, 128
          %775 = vsyncadd %s766, %s774
          %s776 = sadd.s32 %s23, %s24
          %s777 = smul.addr %s776, 128
          %s778 = scalar_lea.hbm %s3, %s777
          %s780 = sshll.u32 %s769, 4
          %s781 = int_to_ptr.vmem [resolvable:$true] %s780
          %783 = dma.vmem_to_hbm [thread:$0]  %s781, 128, %s778, %s766
        $region48: #{tpu_custom_call.1} parent=31 // pred_fallthru
          _
      $region32: #{tpu_custom_call.1} parent=5 // pred_fallthru
        _
      %p784 = scmp.le.s32.totalorder 2, %s14
      // Predicated region
      $region49: #{tpu_custom_call.1} parent=5 // pred_check
        %p785 = pneg %p784
      $region50: #{tpu_custom_call.1} parent=5 // pred_check_branch
        %787 = sbr.rel (%p785) target = $region52
      $region51: #{tpu_custom_call.1} parent=5 // pred_region
        %s788 = ssub.s32 %s14, 2
        // Predicated region
        $region53: #{tpu_custom_call.1} parent=51 // pred_check
          %p789 = pneg %p130
        $region54: #{tpu_custom_call.1} parent=51 // pred_check_branch
          %791 = sbr.rel (%p789) target = $region56
        $region55: #{tpu_custom_call.1} parent=51 // pred_region
          %s792 = sand.u32 %s115, 1
          %s793 = scalar_lea.sflag [#allocation4], %s792
          %s794 = sand.u32 %s115, 1
          %s795 = smul.addr %s794, 8
          %s796 = scalar_lea.vmem [#allocation8], %s795
          %797 = dma.done %s793, 128
        $region56: #{tpu_custom_call.1} parent=51 // pred_fallthru
          _
      $region52: #{tpu_custom_call.1} parent=5 // pred_fallthru
        _
    $region6: #{tpu_custom_call.1} parent=1 // loop_footer
      %s18 = sadd.s32 1, %s14
    $region7: #{tpu_custom_call.1} parent=1 // loop_footer_branch
      %13 = sbr.rel target = $region3
    $region8: #{tpu_custom_call.1} parent=1 // loop_exit
      _
    %798 = vsyncpa [#allocation3], 1
    %s799 = scalar_lea.sflag [#allocation3], 1
    %800 = vsyncpa %s799, 1
    %801 = vsyncpa [#allocation6], 1
    %802 = vsyncpa [#allocation4], 1
    %s803 = scalar_lea.sflag [#allocation4], 1
    %804 = vsyncpa %s803, 1

// kernel: tpu_custom_call.1
$region0: #{tpu_custom_call.1}
  #allocation0 [shape = 'u32[]', space=smem, size = 0x4, offset = 0x4, fixed_abs, tag = 'smem constant byte address 0x4 - core index']
  #allocation1 [shape = 'u32[144,128]{1,0:T(1,128)}', space=vmem, size = 0x12000, scoped, tag = 'internal scratch']
  %s0 = inlined_call_operand.hbm [shape: s32[2,8], index: 0, kind: input, shape index: {}]
  %s1 = inlined_call_operand.hbm [shape: f32[32,128], index: 1, kind: input, shape index: {}]
  %s2 = inlined_call_operand.hbm [shape: f32[8,128], index: 2, kind: input, shape index: {}]
  %s3 = inlined_call_operand.hbm [shape: f32[2,8,128], index: 3, kind: output, shape index: {}]
  %s4 = sld [smem:[#allocation0]]
  $region57: #{tpu_custom_call.1} parent=0
    _
  %s6 = ssub.s32 1, %s4
  %s7 = scalar_select 0, %s6, %s4
  $region1: #{tpu_custom_call.1} parent=0
    #allocation2 [shape = 'u8[1024]{0}', space=vmem, size = 0x400, scoped, tag = 'input window, operand 0, single buffered']
    #allocation3 [shape = 's32[2]{0}', space=sflag, size = 0x8, scoped, tag = 'scoped memory for tpu_custom_call.1']
    #allocation4 [shape = 's32[2]{0}', space=sflag, size = 0x8, scoped, tag = 'scoped memory for tpu_custom_call.1']
    #allocation5 [shape = 'u8[16384]{0}', space=vmem, size = 0x4000, scoped, tag = 'input window, operand 1, single buffered']
    #allocation6 [shape = 's32[1]{0}', space=sflag, size = 0x4, scoped, tag = 'scoped memory for tpu_custom_call.1']
    #allocation7 [shape = 'u8[4096]{0}', space=vmem, size = 0x1000, scoped, tag = 'input window, operand 2, single buffered']
    #allocation8 [shape = 'u8[8192]{0}', space=vmem, size = 0x2000, scoped, tag = 'output window, operand 0']
    %8 = vsyncpa [#allocation3], 0
    %9 = vsyncpa [#allocation6], 0
    %10 = vsyncpa [#allocation4], 0
    %s11 = scalar_lea.sflag [#allocation4], 1
    %12 = vsyncpa %s11, 0
    loop: start=0, step=1, limit=4
    $region2: #{tpu_custom_call.1} parent=1 // loop_pre_header
      _
    $region3: #{tpu_custom_call.1} parent=1 // loop_header
      %s14 = sphi 0, %s18
      %p15 = scmp.ge.s32.totalorder %s14, 4
      %s21 = sphi 0, %s33
      %s22 = sphi 0, %s29
      %s23 = sphi 0, %s21
      %s24 = sphi 0, %s22
      %s25 = sphi 0, %s23
      %s26 = sphi 0, %s24
      %s36 = sphi 0, %s38
      %s39 = sphi 0, %s36
      %s40 = sphi 0, %s39
      %s56 = sphi 0, %s40
      %s60 = sphi 0, %s60
      %s62 = sphi 0, %s60
      %s63 = sphi 0, %s62
      %s77 = sphi 0, %s63
      %s83 = sphi 0, %s85
      %s86 = sphi 0, %s83
      %s87 = sphi 0, %s86
      %s103 = sphi 0, %s87
      %s111 = sphi 0, %s113
      %s114 = sphi 0, %s111
      %s115 = sphi 0, %s114
      %s131 = sphi 0, %s115
    $region4: #{tpu_custom_call.1} parent=1 // loop_header_branch
      %17 = sbr.rel (%p15) target = $region8
    $region5: #{tpu_custom_call.1} parent=1 // loop_body
      %s19 = ssub.s32 %s14, 1
      %s20 = ssub.s32 %s14, 2
      %s27 = sadd.s32 1, %s22
      %p28 = scmp.ge.s32.totalorder %s27, 2
      %s29 = scalar_select %p28, 0, %s27
      %s30 = sadd.s32 1, %s21
      %s31 = scalar_select %p28, %s30, %s21
      %p32 = scmp.ge.s32.totalorder %s31, 1
      %s33 = scalar_select %p32, 0, %s31
      %s34 = ssub.s32 %s21, %s33
      %p35 = scmp.eq.s32.totalorder %s34, 0
      %s37 = sadd.s32 %s36, 1
      %s38 = scalar_select %p35, %s36, %s37
      %p41 = pneg %p35
      %p42 = scmp.eq.s32.totalorder %s14, 1
      %p43 = por %p41, %p42
      %p44 = scmp.ne.s32.totalorder %s36, %s39
      %p45 = scmp.eq.s32.totalorder %s14, 0
      %p46 = por %p44, %p45
      %p47 = scmp.ne.s32.totalorder %s36, %s39
      %p48 = scmp.eq.s32.totalorder %s19, 1
      %p49 = por %p47, %p48
      %p50 = scmp.ne.s32.totalorder %s39, %s40
      %p51 = scmp.eq.s32.totalorder %s19, 0
      %p52 = por %p50, %p51
      %p53 = scmp.ne.s32.totalorder %s39, %s40
      %p54 = scmp.eq.s32.totalorder %s20, 1
      %p55 = por %p53, %p54
      %p57 = scmp.ne.s32.totalorder %s40, %s56
      %p58 = scmp.eq.s32.totalorder %s20, 0
      %p59 = por %p57, %p58
      %s61 = sadd.s32 %s60, 1
      %p64 = scmp.eq.s32.totalorder %s14, 1
      %p65 = scmp.ne.s32.totalorder %s60, %s62
      %p66 = scmp.eq.s32.totalorder %s14, 0
      %p67 = por %p65, %p66
      %p68 = scmp.ne.s32.totalorder %s60, %s62
      %p69 = scmp.eq.s32.totalorder %s19, 1
      %p70 = por %p68, %p69
      %p71 = scmp.ne.s32.totalorder %s62, %s63
      %p72 = scmp.eq.s32.totalorder %s19, 0
      %p73 = por %p71, %p72
      %p74 = scmp.ne.s32.totalorder %s62, %s63
      %p75 = scmp.eq.s32.totalorder %s20, 1
      %p76 = por %p74, %p75
      %p78 = scmp.ne.s32.totalorder %s63, %s77
      %p79 = scmp.eq.s32.totalorder %s20, 0
      %p80 = por %p78, %p79
      %s81 = ssub.s32 %s21, %s33
      %p82 = scmp.eq.s32.totalorder %s81, 0
      %s84 = sadd.s32 %s83, 1
      %s85 = scalar_select %p82, %s83, %s84
      %p88 = pneg %p82
      %p89 = scmp.eq.s32.totalorder %s14, 1
      %p90 = por %p88, %p89
      %p91 = scmp.ne.s32.totalorder %s83, %s86
      %p92 = scmp.eq.s32.totalorder %s14, 0
      %p93 = por %p91, %p92
      %p94 = scmp.ne.s32.totalorder %s83, %s86
      %p95 = scmp.eq.s32.totalorder %s19, 1
      %p96 = por %p94, %p95
      %p97 = scmp.ne.s32.totalorder %s86, %s87
      %p98 = scmp.eq.s32.totalorder %s19, 0
      %p99 = por %p97, %p98
      %p100 = scmp.ne.s32.totalorder %s86, %s87
      %p101 = scmp.eq.s32.totalorder %s20, 1
      %p102 = por %p100, %p101
      %p104 = scmp.ne.s32.totalorder %s87, %s103
      %p105 = scmp.eq.s32.totalorder %s20, 0
      %p106 = por %p104, %p105
      %s107 = ssub.s32 %s22, %s29
      %s108 = ssub.s32 %s21, %s33
      %s109 = sor.u32 %s107, %s108
      %p110 = scmp.eq.s32.totalorder %s109, 0
      %s112 = sadd.s32 %s111, 1
      %s113 = scalar_select %p110, %s111, %s112
      %p116 = pneg %p110
      %p117 = scmp.eq.s32.totalorder %s14, 1
      %p118 = por %p116, %p117
      %p119 = scmp.ne.s32.totalorder %s111, %s114
      %p120 = scmp.eq.s32.totalorder %s14, 0
      %p121 = por %p119, %p120
      %p122 = scmp.ne.s32.totalorder %s111, %s114
      %p123 = scmp.eq.s32.totalorder %s19, 1
      %p124 = por %p122, %p123
      %p125 = scmp.ne.s32.totalorder %s114, %s115
      %p126 = scmp.eq.s32.totalorder %s19, 0
      %p127 = por %p125, %p126
      %p128 = scmp.ne.s32.totalorder %s114, %s115
      %p129 = scmp.eq.s32.totalorder %s20, 1
      %p130 = por %p128, %p129
      %p132 = scmp.ne.s32.totalorder %s115, %s131
      %p133 = scmp.eq.s32.totalorder %s20, 0
      %p134 = por %p132, %p133
      %p135 = scmp.le.s32.totalorder 1, %s14
      %p136 = scmp.lt.s32.totalorder %s14, 3
      %p137 = pnand %p135, %p136
      %p138 = pneg %p137
      // Predicated region
      $region9: #{tpu_custom_call.1} parent=5 // pred_check
        _
      $region10: #{tpu_custom_call.1} parent=5 // pred_check_branch
        %140 = sbr.rel (%p137) target = $region12
      $region11: #{tpu_custom_call.1} parent=5 // pred_region
        %s141 = ssub.s32 %s14, 1
        // Predicated region
        $region13: #{tpu_custom_call.1} parent=11 // pred_check
          %p142 = pneg %p52
        $region14: #{tpu_custom_call.1} parent=11 // pred_check_branch
          %144 = sbr.rel (%p142) target = $region16
        $region15: #{tpu_custom_call.1} parent=11 // pred_region
          %s146 = ssub.s32 32, 32
          %147 = vsyncadd [#allocation3], %s146
          %s148 = smul.addr %s23, 32
          %s149 = scalar_lea.hbm %s0, %s148
          %s151 = sshll.u32 [#allocation2], 4
          %s152 = int_to_ptr.vmem [resolvable:$true] %s151
          %154 = dma.hbm_to_vmem [thread:$0]  %s149, 32, %s152, [#allocation3]
        $region16: #{tpu_custom_call.1} parent=11 // pred_fallthru
          _
        // Predicated region
        $region17: #{tpu_custom_call.1} parent=11 // pred_check
          %p155 = pneg %p73
        $region18: #{tpu_custom_call.1} parent=11 // pred_check_branch
          %157 = sbr.rel (%p155) target = $region20
        $region19: #{tpu_custom_call.1} parent=11 // pred_region
          %s159 = ssub.s32 512, 512
          %160 = vsyncadd [#allocation6], %s159
          %s161 = sshll.u32 [#allocation5], 4
          %s162 = int_to_ptr.vmem [resolvable:$true] %s161
          %167 = dma.hbm_to_vmem [thread:$0]  %s1, 512, %s162, [#allocation6], 128, 128, 8
        $region20: #{tpu_custom_call.1} parent=11 // pred_fallthru
          _
        // Predicated region
        $region21: #{tpu_custom_call.1} parent=11 // pred_check
          %p168 = pneg %p99
        $region22: #{tpu_custom_call.1} parent=11 // pred_check_branch
          %170 = sbr.rel (%p168) target = $region24
        $region23: #{tpu_custom_call.1} parent=11 // pred_region
          %s172 = ssub.s32 128, 128
          %173 = vsyncadd [#allocation6], %s172
          %s174 = smul.addr %s23, 128
          %s175 = scalar_lea.hbm %s2, %s174
          %s177 = sshll.u32 [#allocation7], 4
          %s178 = int_to_ptr.vmem [resolvable:$true] %s177
          %180 = dma.hbm_to_vmem [thread:$0]  %s175, 128, %s178, [#allocation6]
        $region24: #{tpu_custom_call.1} parent=11 // pred_fallthru
          _
      $region12: #{tpu_custom_call.1} parent=5 // pred_fallthru
        _
      %p181 = scmp.lt.s32.totalorder %s14, 2
      // Predicated region
      $region25: #{tpu_custom_call.1} parent=5 // pred_check
        %p182 = pneg %p181
      $region26: #{tpu_custom_call.1} parent=5 // pred_check_branch
        %184 = sbr.rel (%p182) target = $region28
      $region27: #{tpu_custom_call.1} parent=5 // pred_region
        _
      $region28: #{tpu_custom_call.1} parent=5 // pred_fallthru
        _
      %p185 = scmp.le.s32.totalorder 1, %s14
      %p186 = scmp.lt.s32.totalorder %s14, 3
      %p187 = pnand %p185, %p186
      %p188 = pneg %p187
      // Predicated region
      $region29: #{tpu_custom_call.1} parent=5 // pred_check
        _
      $region30: #{tpu_custom_call.1} parent=5 // pred_check_branch
        %190 = sbr.rel (%p187) target = $region32
      $region31: #{tpu_custom_call.1} parent=5 // pred_region
        %s191 = ssub.s32 %s14, 1
        // Predicated region
        $region33: #{tpu_custom_call.1} parent=31 // pred_check
          %p192 = pneg %p52
        $region34: #{tpu_custom_call.1} parent=31 // pred_check_branch
          %194 = sbr.rel (%p192) target = $region36
        $region35: #{tpu_custom_call.1} parent=31 // pred_region
          %195 = dma.done [#allocation3], 32
        $region36: #{tpu_custom_call.1} parent=31 // pred_fallthru
          _
        // Predicated region
        $region37: #{tpu_custom_call.1} parent=31 // pred_check
          %p196 = pneg %p73
        $region38: #{tpu_custom_call.1} parent=31 // pred_check_branch
          %198 = sbr.rel (%p196) target = $region40
        $region39: #{tpu_custom_call.1} parent=31 // pred_region
          %199 = dma.done [#allocation6], 512
        $region40: #{tpu_custom_call.1} parent=31 // pred_fallthru
          _
        // Predicated region
        $region41: #{tpu_custom_call.1} parent=31 // pred_check
          %p200 = pneg %p99
        $region42: #{tpu_custom_call.1} parent=31 // pred_check_branch
          %202 = sbr.rel (%p200) target = $region44
        $region43: #{tpu_custom_call.1} parent=31 // pred_region
          %203 = dma.done [#allocation6], 128
        $region44: #{tpu_custom_call.1} parent=31 // pred_fallthru
          _
        %p204 = pneg %p52
        %p205 = pneg %p49
        %p206 = pneg %p73
        %p207 = pneg %p70
        %p208 = pneg %p99
        %p209 = pneg %p96
        %p210 = pneg %p127
        %p211 = pneg %p124
        %s212 = sand.u32 %s114, 1
        %s213 = scalar_lea.sflag [#allocation4], %s212
        %s214 = sand.u32 %s114, 1
        %s215 = smul.addr %s214, 8
        %s216 = scalar_lea.vmem [#allocation8], %s215
        %s217 = scalar_lea.vmem [#allocation2], %s24
        %v218 = vld [vmem:[%s217] sm:$0x1]
        %v219 = vlaneseq
        %v220 = vshrl.u32 %v219, 7
        %v221 = vadd.s32 %v220, 8
        %v222 = vadd.s32 %v220, 16
        %v223 = vadd.s32 %v220, 24
        %v224 = vlaneseq
        %v225 = vshrl.u32 %v224, 7
        %v226 = vsub.s32 0, %v225
        %v227 = vrot.slane %v218, %v226
        %vm228 = vcmp.eq.s32.totalorder %v220, %v227
        %vm229 = vcmp.eq.s32.totalorder %v221, %v227
        %vm230 = vcmp.eq.s32.totalorder %v222, %v227
        %vm231 = vcmp.eq.s32.totalorder %v223, %v227
        %v232 = vsel %vm228, 1.0, 0.0
        %v233 = vsel %vm229, 1.0, 0.0
        %v234 = vsel %vm230, 1.0, 0.0
        %v235 = vsel %vm231, 1.0, 0.0
        %v236 = vld [vmem:[#allocation5] sm:$0xff]
        %v237 = vld [vmem:[#allocation5 + $0x8] sm:$0xff]
        %v238 = vld [vmem:[#allocation5 + $0x10] sm:$0xff]
        %v239 = vld [vmem:[#allocation5 + $0x18] sm:$0xff]
        %240 = vxpose.xlu0.b32.start [1/16] %v232, 128
        %241 = vxpose.xlu0.b32.cont [2/16] %v233, 128
        %242 = vxpose.xlu0.b32.cont [3/16] %v234, 128
        %243 = vxpose.xlu0.b32.cont [4/16] %v235, 128
        %244 = vxpose.xlu0.b32.cont [5/16] 0.0, 128
        %245 = vxpose.xlu0.b32.cont [6/16] 0.0, 128
        %246 = vxpose.xlu0.b32.cont [7/16] 0.0, 128
        %247 = vxpose.xlu0.b32.cont [8/16] 0.0, 128
        %248 = vxpose.xlu0.b32.cont [9/16] 0.0, 128
        %249 = vxpose.xlu0.b32.cont [10/16] 0.0, 128
        %250 = vxpose.xlu0.b32.cont [11/16] 0.0, 128
        %251 = vxpose.xlu0.b32.cont [12/16] 0.0, 128
        %252 = vxpose.xlu0.b32.cont [13/16] 0.0, 128
        %253 = vxpose.xlu0.b32.cont [14/16] 0.0, 128
        %254 = vxpose.xlu0.b32.cont [15/16] 0.0, 128
        %255 = vxpose.xlu0.b32.end [16/16] 0.0, 128
        %v256 = vpop.trf.xlu0
        %v257 = vpop.trf.xlu0
        %v258 = vpop.trf.xlu0
        %v259 = vpop.trf.xlu0
        %v260 = vpop.trf.xlu0
        %v261 = vpop.trf.xlu0
        %v262 = vpop.trf.xlu0
        %v263 = vpop.trf.xlu0
        %v264 = vpop.trf.xlu0
        %v265 = vpop.trf.xlu0
        %v266 = vpop.trf.xlu0
        %v267 = vpop.trf.xlu0
        %v268 = vpop.trf.xlu0
        %v269 = vpop.trf.xlu0
        %v270 = vpop.trf.xlu0
        %v271 = vpop.trf.xlu0
        %vm272 = vcmask 261120
        %v274 = vsel %vm272, %v256, 0
        %276 = vmatprep.subr.mxu0 0.0
        %v277 = vand.u32 %v236, 4294901760
        %278 = vmatpush1.msra.mxu0 %v277
        %279 = vmatprep.subr.mxu0 0.0
        %v280 = vand.u32 %v237, 4294901760
        %281 = vmatpush1.msra.mxu0 %v280
        %282 = vmatprep.subr.mxu0 0.0
        %v283 = vand.u32 %v238, 4294901760
        %284 = vmatpush1.msra.mxu0 %v283
        %285 = vmatprep.subr.mxu0 0.0
        %v286 = vand.u32 %v239, 4294901760
        %287 = vmatpush1.msra.mxu0 %v286
        %288 = vmatprep.subr.mxu0 0.0
        %289 = vmatpush1.msra.mxu0 0.0
        %290 = vmatprep.subr.mxu0 0.0
        %291 = vmatpush1.msra.mxu0 0.0
        %292 = vmatprep.subr.mxu0 0.0
        %293 = vmatpush1.msra.mxu0 0.0
        %294 = vmatprep.subr.mxu0 0.0
        %295 = vmatpush1.msra.mxu0 0.0
        %296 = vmatprep.subr.mxu0 0.0
        %297 = vmatpush1.msra.mxu0 0.0
        %298 = vmatprep.subr.mxu0 0.0
        %299 = vmatpush1.msra.mxu0 0.0
        %300 = vmatprep.subr.mxu0 0.0
        %301 = vmatpush1.msra.mxu0 0.0
        %302 = vmatprep.subr.mxu0 0.0
        %303 = vmatpush1.msra.mxu0 0.0
        %304 = vmatprep.subr.mxu0 0.0
        %305 = vmatpush1.msra.mxu0 0.0
        %306 = vmatprep.subr.mxu0 0.0
        %307 = vmatpush1.msra.mxu0 0.0
        %308 = vmatprep.subr.mxu0 0.0
        %309 = vmatpush1.msra.mxu0 0.0
        %310 = vmatprep.subr.mxu0 0.0
        %311 = vmatpush1.msra.mxu0 0.0
        %312 = vmatprep.subr.mxu0 0.0
        %313 = vmatpush1.msra.mxu0 0.0
        %314 = vmatprep.subr.mxu0 0.0
        %315 = vmatpush1.msra.mxu0 0.0
        %316 = vmatprep.subr.mxu0 0.0
        %317 = vmatpush1.msra.mxu0 0.0
        %318 = vmatprep.subr.mxu0 0.0
        %319 = vmatpush1.msra.mxu0 0.0
        %320 = vmatprep.subr.mxu0 0.0
        %321 = vmatpush1.msra.mxu0 0.0
        %322 = vmatprep.subr.mxu0 0.0
        %323 = vmatpush1.msra.mxu0 0.0
        %324 = vmatprep.subr.mxu0 0.0
        %325 = vmatpush1.msra.mxu0 0.0
        %326 = vmatprep.subr.mxu0 0.0
        %327 = vmatpush1.msra.mxu0 0.0
        %328 = vmatprep.subr.mxu0 0.0
        %329 = vmatpush1.msra.mxu0 0.0
        %330 = vmatprep.subr.mxu0 0.0
        %331 = vmatpush1.msra.mxu0 0.0
        %332 = vmatprep.subr.mxu0 0.0
        %333 = vmatpush1.msra.mxu0 0.0
        %334 = vmatprep.subr.mxu0 0.0
        %335 = vmatpush1.msra.mxu0 0.0
        %336 = vmatprep.subr.mxu0 0.0
        %337 = vmatpush1.msra.mxu0 0.0
        %338 = vmatprep.subr.mxu0 0.0
        %339 = vmatpush1.msra.mxu0 0.0
        %340 = vmatprep.subr.mxu0 0.0
        %341 = vmatpush1.msra.mxu0 0.0
        %342 = vmatprep.subr.mxu0 0.0
        %343 = vmatpush1.msra.mxu0 0.0
        %344 = vmatprep.mubr.f32.mxu0 0.0
        %v345 = vand.u32 %v274, 4294901760
        %v346 = vsub.f32 %v274, %v345
        %v347 = vand.u32 %v346, 4294901760
        %v348 = vsub.f32 %v346, %v347
        %v349 = vand.u32 %v348, 4294901760
        %350 = vmatmul.mubr.f32.gmra.mrb[0].mxu0 %v349
        %v351 = vpop.f32.mrb[0].mxu0
        %v352 = vadd.f32 0.0, %v351
        %v353 = vpop.f32.mrb[0].mxu0
        %354 = vdwg.mxu0
        %355 = vmatprep.subr.mxu0 0.0
        %v356 = vand.u32 %v236, 4294901760
        %v357 = vsub.f32 %v236, %v356
        %v358 = vand.u32 %v357, 4294901760
        %v359 = vsub.f32 %v357, %v358
        %v360 = vand.u32 %v359, 4294901760
        %361 = vmatpush1.msra.mxu0 %v360
        %362 = vmatprep.subr.mxu0 0.0
        %v363 = vand.u32 %v237, 4294901760
        %v364 = vsub.f32 %v237, %v363
        %v365 = vand.u32 %v364, 4294901760
        %v366 = vsub.f32 %v364, %v365
        %v367 = vand.u32 %v366, 4294901760
        %368 = vmatpush1.msra.mxu0 %v367
        %369 = vmatprep.subr.mxu0 0.0
        %v370 = vand.u32 %v238, 4294901760
        %v371 = vsub.f32 %v238, %v370
        %v372 = vand.u32 %v371, 4294901760
        %v373 = vsub.f32 %v371, %v372
        %v374 = vand.u32 %v373, 4294901760
        %375 = vmatpush1.msra.mxu0 %v374
        %376 = vmatprep.subr.mxu0 0.0
        %v377 = vand.u32 %v239, 4294901760
        %v378 = vsub.f32 %v239, %v377
        %v379 = vand.u32 %v378, 4294901760
        %v380 = vsub.f32 %v378, %v379
        %v381 = vand.u32 %v380, 4294901760
        %382 = vmatpush1.msra.mxu0 %v381
        %383 = vmatprep.subr.mxu0 0.0
        %384 = vmatpush1.msra.mxu0 0.0
        %385 = vmatprep.subr.mxu0 0.0
        %386 = vmatpush1.msra.mxu0 0.0
        %387 = vmatprep.subr.mxu0 0.0
        %388 = vmatpush1.msra.mxu0 0.0
        %389 = vmatprep.subr.mxu0 0.0
        %390 = vmatpush1.msra.mxu0 0.0
        %391 = vmatprep.subr.mxu0 0.0
        %392 = vmatpush1.msra.mxu0 0.0
        %393 = vmatprep.subr.mxu0 0.0
        %394 = vmatpush1.msra.mxu0 0.0
        %395 = vmatprep.subr.mxu0 0.0
        %396 = vmatpush1.msra.mxu0 0.0
        %397 = vmatprep.subr.mxu0 0.0
        %398 = vmatpush1.msra.mxu0 0.0
        %399 = vmatprep.subr.mxu0 0.0
        %400 = vmatpush1.msra.mxu0 0.0
        %401 = vmatprep.subr.mxu0 0.0
        %402 = vmatpush1.msra.mxu0 0.0
        %403 = vmatprep.subr.mxu0 0.0
        %404 = vmatpush1.msra.mxu0 0.0
        %405 = vmatprep.subr.mxu0 0.0
        %406 = vmatpush1.msra.mxu0 0.0
        %407 = vmatprep.subr.mxu0 0.0
        %408 = vmatpush1.msra.mxu0 0.0
        %409 = vmatprep.subr.mxu0 0.0
        %410 = vmatpush1.msra.mxu0 0.0
        %411 = vmatprep.subr.mxu0 0.0
        %412 = vmatpush1.msra.mxu0 0.0
        %413 = vmatprep.subr.mxu0 0.0
        %414 = vmatpush1.msra.mxu0 0.0
        %415 = vmatprep.subr.mxu0 0.0
        %416 = vmatpush1.msra.mxu0 0.0
        %417 = vmatprep.subr.mxu0 0.0
        %418 = vmatpush1.msra.mxu0 0.0
        %419 = vmatprep.subr.mxu0 0.0
        %420 = vmatpush1.msra.mxu0 0.0
        %421 = vmatprep.subr.mxu0 0.0
        %422 = vmatpush1.msra.mxu0 0.0
        %423 = vmatprep.subr.mxu0 0.0
        %424 = vmatpush1.msra.mxu0 0.0
        %425 = vmatprep.subr.mxu0 0.0
        %426 = vmatpush1.msra.mxu0 0.0
        %427 = vmatprep.subr.mxu0 0.0
        %428 = vmatpush1.msra.mxu0 0.0
        %429 = vmatprep.subr.mxu0 0.0
        %430 = vmatpush1.msra.mxu0 0.0
        %431 = vmatprep.subr.mxu0 0.0
        %432 = vmatpush1.msra.mxu0 0.0
        %433 = vmatprep.subr.mxu0 0.0
        %434 = vmatpush1.msra.mxu0 0.0
        %435 = vmatprep.subr.mxu0 0.0
        %436 = vmatpush1.msra.mxu0 0.0
        %437 = vmatprep.subr.mxu0 0.0
        %438 = vmatpush1.msra.mxu0 0.0
        %439 = vmatprep.mubr.f32.mxu0 0.0
        %v440 = vand.u32 %v274, 4294901760
        %441 = vmatmul.mubr.f32.gmra.mrb[0].mxu0 %v440
        %v442 = vpop.f32.mrb[0].mxu0
        %v443 = vadd.f32 %v352, %v442
        %v444 = vpop.f32.mrb[0].mxu0
        %445 = vdwg.mxu0
        %446 = vmatprep.subr.mxu0 0.0
        %v447 = vand.u32 %v236, 4294901760
        %v448 = vsub.f32 %v236, %v447
        %449 = vmatpush1.msra.mxu0 %v448
        %450 = vmatprep.subr.mxu0 0.0
        %v451 = vand.u32 %v237, 4294901760
        %v452 = vsub.f32 %v237, %v451
        %453 = vmatpush1.msra.mxu0 %v452
        %454 = vmatprep.subr.mxu0 0.0
        %v455 = vand.u32 %v238, 4294901760
        %v456 = vsub.f32 %v238, %v455
        %457 = vmatpush1.msra.mxu0 %v456
        %458 = vmatprep.subr.mxu0 0.0
        %v459 = vand.u32 %v239, 4294901760
        %v460 = vsub.f32 %v239, %v459
        %461 = vmatpush1.msra.mxu0 %v460
        %462 = vmatprep.subr.mxu0 0.0
        %463 = vmatpush1.msra.mxu0 0.0
        %464 = vmatprep.subr.mxu0 0.0
        %465 = vmatpush1.msra.mxu0 0.0
        %466 = vmatprep.subr.mxu0 0.0
        %467 = vmatpush1.msra.mxu0 0.0
        %468 = vmatprep.subr.mxu0 0.0
        %469 = vmatpush1.msra.mxu0 0.0
        %470 = vmatprep.subr.mxu0 0.0
        %471 = vmatpush1.msra.mxu0 0.0
        %472 = vmatprep.subr.mxu0 0.0
        %473 = vmatpush1.msra.mxu0 0.0
        %474 = vmatprep.subr.mxu0 0.0
        %475 = vmatpush1.msra.mxu0 0.0
        %476 = vmatprep.subr.mxu0 0.0
        %477 = vmatpush1.msra.mxu0 0.0
        %478 = vmatprep.subr.mxu0 0.0
        %479 = vmatpush1.msra.mxu0 0.0
        %480 = vmatprep.subr.mxu0 0.0
        %481 = vmatpush1.msra.mxu0 0.0
        %482 = vmatprep.subr.mxu0 0.0
        %483 = vmatpush1.msra.mxu0 0.0
        %484 = vmatprep.subr.mxu0 0.0
        %485 = vmatpush1.msra.mxu0 0.0
        %486 = vmatprep.subr.mxu0 0.0
        %487 = vmatpush1.msra.mxu0 0.0
        %488 = vmatprep.subr.mxu0 0.0
        %489 = vmatpush1.msra.mxu0 0.0
        %490 = vmatprep.subr.mxu0 0.0
        %491 = vmatpush1.msra.mxu0 0.0
        %492 = vmatprep.subr.mxu0 0.0
        %493 = vmatpush1.msra.mxu0 0.0
        %494 = vmatprep.subr.mxu0 0.0
        %495 = vmatpush1.msra.mxu0 0.0
        %496 = vmatprep.subr.mxu0 0.0
        %497 = vmatpush1.msra.mxu0 0.0
        %498 = vmatprep.subr.mxu0 0.0
        %499 = vmatpush1.msra.mxu0 0.0
        %500 = vmatprep.subr.mxu0 0.0
        %501 = vmatpush1.msra.mxu0 0.0
        %502 = vmatprep.subr.mxu0 0.0
        %503 = vmatpush1.msra.mxu0 0.0
        %504 = vmatprep.subr.mxu0 0.0
        %505 = vmatpush1.msra.mxu0 0.0
        %506 = vmatprep.subr.mxu0 0.0
        %507 = vmatpush1.msra.mxu0 0.0
        %508 = vmatprep.subr.mxu0 0.0
        %509 = vmatpush1.msra.mxu0 0.0
        %510 = vmatprep.subr.mxu0 0.0
        %511 = vmatpush1.msra.mxu0 0.0
        %512 = vmatprep.subr.mxu0 0.0
        %513 = vmatpush1.msra.mxu0 0.0
        %514 = vmatprep.subr.mxu0 0.0
        %515 = vmatpush1.msra.mxu0 0.0
        %516 = vmatprep.subr.mxu0 0.0
        %517 = vmatpush1.msra.mxu0 0.0
        %518 = vmatprep.mubr.f32.mxu0 0.0
        %v519 = vand.u32 %v274, 4294901760
        %v520 = vsub.f32 %v274, %v519
        %521 = vmatmul.mubr.f32.gmra.mrb[0].mxu0 %v520
        %v522 = vpop.f32.mrb[0].mxu0
        %v523 = vadd.f32 %v443, %v522
        %v524 = vpop.f32.mrb[0].mxu0
        %525 = vdwg.mxu0
        %526 = vmatprep.subr.mxu0 0.0
        %v527 = vand.u32 %v236, 4294901760
        %528 = vmatpush1.msra.mxu0 %v527
        %529 = vmatprep.subr.mxu0 0.0
        %v530 = vand.u32 %v237, 4294901760
        %531 = vmatpush1.msra.mxu0 %v530
        %532 = vmatprep.subr.mxu0 0.0
        %v533 = vand.u32 %v238, 4294901760
        %534 = vmatpush1.msra.mxu0 %v533
        %535 = vmatprep.subr.mxu0 0.0
        %v536 = vand.u32 %v239, 4294901760
        %537 = vmatpush1.msra.mxu0 %v536
        %538 = vmatprep.subr.mxu0 0.0
        %539 = vmatpush1.msra.mxu0 0.0
        %540 = vmatprep.subr.mxu0 0.0
        %541 = vmatpush1.msra.mxu0 0.0
        %542 = vmatprep.subr.mxu0 0.0
        %543 = vmatpush1.msra.mxu0 0.0
        %544 = vmatprep.subr.mxu0 0.0
        %545 = vmatpush1.msra.mxu0 0.0
        %546 = vmatprep.subr.mxu0 0.0
        %547 = vmatpush1.msra.mxu0 0.0
        %548 = vmatprep.subr.mxu0 0.0
        %549 = vmatpush1.msra.mxu0 0.0
        %550 = vmatprep.subr.mxu0 0.0
        %551 = vmatpush1.msra.mxu0 0.0
        %552 = vmatprep.subr.mxu0 0.0
        %553 = vmatpush1.msra.mxu0 0.0
        %554 = vmatprep.subr.mxu0 0.0
        %555 = vmatpush1.msra.mxu0 0.0
        %556 = vmatprep.subr.mxu0 0.0
        %557 = vmatpush1.msra.mxu0 0.0
        %558 = vmatprep.subr.mxu0 0.0
        %559 = vmatpush1.msra.mxu0 0.0
        %560 = vmatprep.subr.mxu0 0.0
        %561 = vmatpush1.msra.mxu0 0.0
        %562 = vmatprep.subr.mxu0 0.0
        %563 = vmatpush1.msra.mxu0 0.0
        %564 = vmatprep.subr.mxu0 0.0
        %565 = vmatpush1.msra.mxu0 0.0
        %566 = vmatprep.subr.mxu0 0.0
        %567 = vmatpush1.msra.mxu0 0.0
        %568 = vmatprep.subr.mxu0 0.0
        %569 = vmatpush1.msra.mxu0 0.0
        %570 = vmatprep.subr.mxu0 0.0
        %571 = vmatpush1.msra.mxu0 0.0
        %572 = vmatprep.subr.mxu0 0.0
        %573 = vmatpush1.msra.mxu0 0.0
        %574 = vmatprep.subr.mxu0 0.0
        %575 = vmatpush1.msra.mxu0 0.0
        %576 = vmatprep.subr.mxu0 0.0
        %577 = vmatpush1.msra.mxu0 0.0
        %578 = vmatprep.subr.mxu0 0.0
        %579 = vmatpush1.msra.mxu0 0.0
        %580 = vmatprep.subr.mxu0 0.0
        %581 = vmatpush1.msra.mxu0 0.0
        %582 = vmatprep.subr.mxu0 0.0
        %583 = vmatpush1.msra.mxu0 0.0
        %584 = vmatprep.subr.mxu0 0.0
        %585 = vmatpush1.msra.mxu0 0.0
        %586 = vmatprep.subr.mxu0 0.0
        %587 = vmatpush1.msra.mxu0 0.0
        %588 = vmatprep.subr.mxu0 0.0
        %589 = vmatpush1.msra.mxu0 0.0
        %590 = vmatprep.subr.mxu0 0.0
        %591 = vmatpush1.msra.mxu0 0.0
        %592 = vmatprep.subr.mxu0 0.0
        %593 = vmatpush1.msra.mxu0 0.0
        %594 = vmatprep.mubr.f32.mxu0 0.0
        %v595 = vand.u32 %v274, 4294901760
        %v596 = vsub.f32 %v274, %v595
        %v597 = vand.u32 %v596, 4294901760
        %598 = vmatmul.mubr.f32.gmra.mrb[0].mxu0 %v597
        %v599 = vpop.f32.mrb[0].mxu0
        %v600 = vadd.f32 %v523, %v599
        %v601 = vpop.f32.mrb[0].mxu0
        %602 = vdwg.mxu0
        %603 = vmatprep.subr.mxu0 0.0
        %v604 = vand.u32 %v236, 4294901760
        %v605 = vsub.f32 %v236, %v604
        %v606 = vand.u32 %v605, 4294901760
        %607 = vmatpush1.msra.mxu0 %v606
        %608 = vmatprep.subr.mxu0 0.0
        %v609 = vand.u32 %v237, 4294901760
        %v610 = vsub.f32 %v237, %v609
        %v611 = vand.u32 %v610, 4294901760
        %612 = vmatpush1.msra.mxu0 %v611
        %613 = vmatprep.subr.mxu0 0.0
        %v614 = vand.u32 %v238, 4294901760
        %v615 = vsub.f32 %v238, %v614
        %v616 = vand.u32 %v615, 4294901760
        %617 = vmatpush1.msra.mxu0 %v616
        %618 = vmatprep.subr.mxu0 0.0
        %v619 = vand.u32 %v239, 4294901760
        %v620 = vsub.f32 %v239, %v619
        %v621 = vand.u32 %v620, 4294901760
        %622 = vmatpush1.msra.mxu0 %v621
        %623 = vmatprep.subr.mxu0 0.0
        %624 = vmatpush1.msra.mxu0 0.0
        %625 = vmatprep.subr.mxu0 0.0
        %626 = vmatpush1.msra.mxu0 0.0
        %627 = vmatprep.subr.mxu0 0.0
        %628 = vmatpush1.msra.mxu0 0.0
        %629 = vmatprep.subr.mxu0 0.0
        %630 = vmatpush1.msra.mxu0 0.0
        %631 = vmatprep.subr.mxu0 0.0
        %632 = vmatpush1.msra.mxu0 0.0
        %633 = vmatprep.subr.mxu0 0.0
        %634 = vmatpush1.msra.mxu0 0.0
        %635 = vmatprep.subr.mxu0 0.0
        %636 = vmatpush1.msra.mxu0 0.0
        %637 = vmatprep.subr.mxu0 0.0
        %638 = vmatpush1.msra.mxu0 0.0
        %639 = vmatprep.subr.mxu0 0.0
        %640 = vmatpush1.msra.mxu0 0.0
        %641 = vmatprep.subr.mxu0 0.0
        %642 = vmatpush1.msra.mxu0 0.0
        %643 = vmatprep.subr.mxu0 0.0
        %644 = vmatpush1.msra.mxu0 0.0
        %645 = vmatprep.subr.mxu0 0.0
        %646 = vmatpush1.msra.mxu0 0.0
        %647 = vmatprep.subr.mxu0 0.0
        %648 = vmatpush1.msra.mxu0 0.0
        %649 = vmatprep.subr.mxu0 0.0
        %650 = vmatpush1.msra.mxu0 0.0
        %651 = vmatprep.subr.mxu0 0.0
        %652 = vmatpush1.msra.mxu0 0.0
        %653 = vmatprep.subr.mxu0 0.0
        %654 = vmatpush1.msra.mxu0 0.0
        %655 = vmatprep.subr.mxu0 0.0
        %656 = vmatpush1.msra.mxu0 0.0
        %657 = vmatprep.subr.mxu0 0.0
        %658 = vmatpush1.msra.mxu0 0.0
        %659 = vmatprep.subr.mxu0 0.0
        %660 = vmatpush1.msra.mxu0 0.0
        %661 = vmatprep.subr.mxu0 0.0
        %662 = vmatpush1.msra.mxu0 0.0
        %663 = vmatprep.subr.mxu0 0.0
        %664 = vmatpush1.msra.mxu0 0.0
        %665 = vmatprep.subr.mxu0 0.0
        %666 = vmatpush1.msra.mxu0 0.0
        %667 = vmatprep.subr.mxu0 0.0
        %668 = vmatpush1.msra.mxu0 0.0
        %669 = vmatprep.subr.mxu0 0.0
        %670 = vmatpush1.msra.mxu0 0.0
        %671 = vmatprep.subr.mxu0 0.0
        %672 = vmatpush1.msra.mxu0 0.0
        %673 = vmatprep.subr.mxu0 0.0
        %674 = vmatpush1.msra.mxu0 0.0
        %675 = vmatprep.subr.mxu0 0.0
        %676 = vmatpush1.msra.mxu0 0.0
        %677 = vmatprep.subr.mxu0 0.0
        %678 = vmatpush1.msra.mxu0 0.0
        %679 = vmatprep.mubr.f32.mxu0 0.0
        %v680 = vand.u32 %v274, 4294901760
        %681 = vmatmul.mubr.f32.gmra.mrb[0].mxu0 %v680
        %v682 = vpop.f32.mrb[0].mxu0
        %v683 = vadd.f32 %v600, %v682
        %v684 = vpop.f32.mrb[0].mxu0
        %685 = vdwg.mxu0
        %686 = vmatprep.subr.mxu0 0.0
        %v687 = vand.u32 %v236, 4294901760
        %688 = vmatpush1.msra.mxu0 %v687
        %689 = vmatprep.subr.mxu0 0.0
        %v690 = vand.u32 %v237, 4294901760
        %691 = vmatpush1.msra.mxu0 %v690
        %692 = vmatprep.subr.mxu0 0.0
        %v693 = vand.u32 %v238, 4294901760
        %694 = vmatpush1.msra.mxu0 %v693
        %695 = vmatprep.subr.mxu0 0.0
        %v696 = vand.u32 %v239, 4294901760
        %697 = vmatpush1.msra.mxu0 %v696
        %698 = vmatprep.subr.mxu0 0.0
        %699 = vmatpush1.msra.mxu0 0.0
        %700 = vmatprep.subr.mxu0 0.0
        %701 = vmatpush1.msra.mxu0 0.0
        %702 = vmatprep.subr.mxu0 0.0
        %703 = vmatpush1.msra.mxu0 0.0
        %704 = vmatprep.subr.mxu0 0.0
        %705 = vmatpush1.msra.mxu0 0.0
        %706 = vmatprep.subr.mxu0 0.0
        %707 = vmatpush1.msra.mxu0 0.0
        %708 = vmatprep.subr.mxu0 0.0
        %709 = vmatpush1.msra.mxu0 0.0
        %710 = vmatprep.subr.mxu0 0.0
        %711 = vmatpush1.msra.mxu0 0.0
        %712 = vmatprep.subr.mxu0 0.0
        %713 = vmatpush1.msra.mxu0 0.0
        %714 = vmatprep.subr.mxu0 0.0
        %715 = vmatpush1.msra.mxu0 0.0
        %716 = vmatprep.subr.mxu0 0.0
        %717 = vmatpush1.msra.mxu0 0.0
        %718 = vmatprep.subr.mxu0 0.0
        %719 = vmatpush1.msra.mxu0 0.0
        %720 = vmatprep.subr.mxu0 0.0
        %721 = vmatpush1.msra.mxu0 0.0
        %722 = vmatprep.subr.mxu0 0.0
        %723 = vmatpush1.msra.mxu0 0.0
        %724 = vmatprep.subr.mxu0 0.0
        %725 = vmatpush1.msra.mxu0 0.0
        %726 = vmatprep.subr.mxu0 0.0
        %727 = vmatpush1.msra.mxu0 0.0
        %728 = vmatprep.subr.mxu0 0.0
        %729 = vmatpush1.msra.mxu0 0.0
        %730 = vmatprep.subr.mxu0 0.0
        %731 = vmatpush1.msra.mxu0 0.0
        %732 = vmatprep.subr.mxu0 0.0
        %733 = vmatpush1.msra.mxu0 0.0
        %734 = vmatprep.subr.mxu0 0.0
        %735 = vmatpush1.msra.mxu0 0.0
        %736 = vmatprep.subr.mxu0 0.0
        %737 = vmatpush1.msra.mxu0 0.0
        %738 = vmatprep.subr.mxu0 0.0
        %739 = vmatpush1.msra.mxu0 0.0
        %740 = vmatprep.subr.mxu0 0.0
        %741 = vmatpush1.msra.mxu0 0.0
        %742 = vmatprep.subr.mxu0 0.0
        %743 = vmatpush1.msra.mxu0 0.0
        %744 = vmatprep.subr.mxu0 0.0
        %745 = vmatpush1.msra.mxu0 0.0
        %746 = vmatprep.subr.mxu0 0.0
        %747 = vmatpush1.msra.mxu0 0.0
        %748 = vmatprep.subr.mxu0 0.0
        %749 = vmatpush1.msra.mxu0 0.0
        %750 = vmatprep.subr.mxu0 0.0
        %751 = vmatpush1.msra.mxu0 0.0
        %752 = vmatprep.subr.mxu0 0.0
        %753 = vmatpush1.msra.mxu0 0.0
        %754 = vmatprep.mubr.f32.mxu0 0.0
        %v755 = vand.u32 %v274, 4294901760
        %756 = vmatmul.mubr.f32.gmra.mrb[0].mxu0 %v755
        %v757 = vpop.f32.mrb[0].mxu0
        %v758 = vadd.f32 %v683, %v757
        %v759 = vpop.f32.mrb[0].mxu0
        %760 = vdwg.mxu0
        %v761 = vmul.f32 %v758, 11.313708
        %v762 = vld [vmem:[#allocation7] sm:$0xff]
        %v763 = vadd.f32 %v761, %v762
        %764 = vst [vmem:[%s216] sm:$0xff] %v763
        %s765 = sand.u32 %s114, 1
        %s766 = scalar_lea.sflag [#allocation4], %s765
        %s767 = sand.u32 %s114, 1
        %s768 = smul.addr %s767, 8
        %s769 = scalar_lea.vmem [#allocation8], %s768
        // Predicated region
        $region45: #{tpu_custom_call.1} parent=31 // pred_check
          %p770 = pneg %p124
        $region46: #{tpu_custom_call.1} parent=31 // pred_check_branch
          %772 = sbr.rel (%p770) target = $region48
        $region47: #{tpu_custom_call.1} parent=31 // pred_region
          %s774 = ssub.s32 128, 128
          %775 = vsyncadd %s766, %s774
          %s776 = sadd.s32 %s23, %s24
          %s777 = smul.addr %s776, 128
          %s778 = scalar_lea.hbm %s3, %s777
          %s780 = sshll.u32 %s769, 4
          %s781 = int_to_ptr.vmem [resolvable:$true] %s780
          %783 = dma.vmem_to_hbm [thread:$0]  %s781, 128, %s778, %s766
        $region48: #{tpu_custom_call.1} parent=31 // pred_fallthru
          _
      $region32: #{tpu_custom_call.1} parent=5 // pred_fallthru
        _
      %p784 = scmp.le.s32.totalorder 2, %s14
      // Predicated region
      $region49: #{tpu_custom_call.1} parent=5 // pred_check
        %p785 = pneg %p784
      $region50: #{tpu_custom_call.1} parent=5 // pred_check_branch
        %787 = sbr.rel (%p785) target = $region52
      $region51: #{tpu_custom_call.1} parent=5 // pred_region
        %s788 = ssub.s32 %s14, 2
        // Predicated region
        $region53: #{tpu_custom_call.1} parent=51 // pred_check
          %p789 = pneg %p130
        $region54: #{tpu_custom_call.1} parent=51 // pred_check_branch
          %791 = sbr.rel (%p789) target = $region56
        $region55: #{tpu_custom_call.1} parent=51 // pred_region
          %s792 = sand.u32 %s115, 1
          %s793 = scalar_lea.sflag [#allocation4], %s792
          %s794 = sand.u32 %s115, 1
          %s795 = smul.addr %s794, 8
          %s796 = scalar_lea.vmem [#allocation8], %s795
          %797 = dma.done %s793, 128
        $region56: #{tpu_custom_call.1} parent=51 // pred_fallthru
          _
      $region52: #{tpu_custom_call.1} parent=5 // pred_fallthru
        _
    $region6: #{tpu_custom_call.1} parent=1 // loop_footer
      %s18 = sadd.s32 1, %s14
    $region7: #{tpu_custom_call.1} parent=1 // loop_footer_branch
      %13 = sbr.rel target = $region3
    $region8: #{tpu_custom_call.1} parent=1 // loop_exit
      _
    %798 = vsyncpa [#allocation3], 1
    %s799 = scalar_lea.sflag [#allocation3], 1
    %800 = vsyncpa %s799, 1
    %801 = vsyncpa [#allocation6], 1
    %802 = vsyncpa [#allocation4], 1
    %s803 = scalar_lea.sflag [#allocation4], 1
    %804 = vsyncpa %s803, 1

</llo_original>
